<compile_context>
chip_gen: v7x
topology: tpu7x:2x2x1
jax: 0.10.0
libtpu: 0.0.40
codegen_flags: <defaults>
</compile_context>

<pallas_src>
import math
import functools

import jax
import jax.numpy as jnp
from jax import lax
from jax.experimental import pallas as pl
from jax.experimental.pallas import tpu as pltpu


# ---------------------------------------------------------------------------
# In-kernel helpers (pure jnp, traced inside the Pallas kernel body)
# ---------------------------------------------------------------------------
def _layernorm(x, scale, shift, eps=1e-5):
    mean = jnp.mean(x, axis=-1, keepdims=True)
    var = jnp.mean((x - mean) ** 2, axis=-1, keepdims=True)  # unbiased=False
    return scale * ((x - mean) * lax.rsqrt(var + eps)) + shift


def _gelu_tanh(x):
    return 0.5 * x * (1.0 + jnp.tanh(math.sqrt(2.0 / math.pi) * (x + 0.044715 * x ** 3)))


# ---------------------------------------------------------------------------
# Pallas kernel: one (batch, query-tile) step of the transformer block
# ---------------------------------------------------------------------------
def transformer_block_kernel(num_heads,
                             xq_ref,          # (1, TQ, D) f32  query tile (+ residual)
                             xf_ref,          # (1, T,  D) f32  full sequence (for K/V)
                             ln1_s_ref, ln1_b_ref,      # (1, D) f32
                             wq_ref, wk_ref, wv_ref,    # (H, D, hd)  bf16
                             wo_ref, bo_ref,            # (H, hd, D) bf16, (1, D) f32
                             ln2_s_ref, ln2_b_ref,      # (1, D) f32
                             w1_ref, b1_ref,            # (D, 4D) bf16, (1, 4D) f32
                             w2_ref, b2_ref,            # (4D, D) bf16, (1, D) f32
                             out_ref):                  # (1, TQ, D)
    cdt = wq_ref.dtype                   # matmul compute dtype (bf16)
    xq = xq_ref[0]                       # (TQ, D) f32
    xf = xf_ref[0]                       # (T,  D) f32
    TQ, D = xq.shape
    T = xf.shape[0]
    hd = D // num_heads
    inv_sqrt_hd = 1.0 / math.sqrt(hd)
    qi = pl.program_id(1)

    # ---- LayerNorm 1 (f32), then cast activations to bf16 for the MXU ----
    xq_n = _layernorm(xq, ln1_s_ref[...], ln1_b_ref[...]).astype(cdt)   # (TQ, D)
    xf_n = _layernorm(xf, ln1_s_ref[...], ln1_b_ref[...]).astype(cdt)   # (T,  D)

    # ---- Head-batched Q/K/V projections (head axis leading everywhere) ----
    xq_b = jnp.broadcast_to(xq_n[None], (num_heads, TQ, D))             # (H, TQ, D)
    xf_b = jnp.broadcast_to(xf_n[None], (num_heads, T, D))              # (H, T,  D)

    qh = jnp.einsum('htd,hdk->htk', xq_b, wq_ref[...],
                    preferred_element_type=jnp.float32)                 # (H, TQ, hd)
    kh = jnp.einsum('htd,hdk->htk', xf_b, wk_ref[...],
                    preferred_element_type=jnp.float32)                 # (H, T, hd)
    vh = jnp.einsum('htd,hdk->htk', xf_b, wv_ref[...],
                    preferred_element_type=jnp.float32)                 # (H, T, hd)

    # Fold 1/sqrt(hd) into q (cheap) instead of scaling the (TQ, T) scores.
    qh = (qh * inv_sqrt_hd).astype(cdt)
    kh = kh.astype(cdt)
    vh = vh.astype(cdt)

    # ---- Scores: contraction on last dims -> no explicit k transpose ----
    scores = jnp.einsum('hqd,hkd->hqk', qh, kh,
                        preferred_element_type=jnp.float32)             # (H, TQ, T)

    # Tile-local causal mask (global query index = qi*TQ + local row).
    row = lax.broadcasted_iota(jnp.int32, (num_heads, TQ, T), 1) + qi * TQ
    col = lax.broadcasted_iota(jnp.int32, (num_heads, TQ, T), 2)
    scores = jnp.where(col > row, -jnp.inf, scores)

    # ---- Softmax (f32), reciprocal on the EUP slot ----
    m = jnp.max(scores, axis=-1, keepdims=True)
    e = jnp.exp(scores - m)
    p = e * pl.reciprocal(jnp.sum(e, axis=-1, keepdims=True), approx=True)

    # ---- Context and output projection, still head-batched ----
    ctx = jnp.einsum('hqk,hkd->hqd', p.astype(cdt), vh,
                     preferred_element_type=jnp.float32)                # (H, TQ, hd)
    attn_h = jnp.einsum('hqd,hdo->hqo', ctx.astype(cdt), wo_ref[...],
                        preferred_element_type=jnp.float32)             # (H, TQ, D)
    attn = jnp.sum(attn_h, axis=0) + bo_ref[...]                        # (TQ, D) f32

    x1 = xq + attn                       # residual 1 (dropout = identity)

    # ---- LayerNorm 2 + FeedForward (bf16 matmuls, f32 accumulate) ----
    x2n = _layernorm(x1, ln2_s_ref[...], ln2_b_ref[...]).astype(cdt)
    h1 = jnp.dot(x2n, w1_ref[...], preferred_element_type=jnp.float32) + b1_ref[...]
    h1 = _gelu_tanh(h1).astype(cdt)
    ff = jnp.dot(h1, w2_ref[...], preferred_element_type=jnp.float32) + b2_ref[...]

    out_ref[0] = (x1 + ff).astype(out_ref.dtype)   # residual 2 (dropout = identity)


# ---------------------------------------------------------------------------
# Wrapper: pallas_call with grid over (batch, query tiles)
# ---------------------------------------------------------------------------
def transformer_block(x, params, num_heads, *, q_tile=128,
                      compute_dtype=jnp.bfloat16):
    (ln1_s, ln1_b, wq, wk, wv, wo, bo, ln2_s, ln2_b, w1, b1, w2, b2) = params
    B, T, D = x.shape
    H4 = w1.shape[1]
    hd = D // num_heads

    TQ = min(q_tile, T)
    assert T % TQ == 0, "T must be divisible by the query tile"  # TODO(synk): ragged tail tiles
    NQ = T // TQ

    # Pre-cast matmul weights to bf16 and reshape to head-major layouts so the
    # kernel's batched dot_generals need no in-kernel relayout / transpose.
    wq_r = wq.reshape(D, num_heads, hd).transpose(1, 0, 2).astype(compute_dtype)  # (H, D, hd)
    wk_r = wk.reshape(D, num_heads, hd).transpose(1, 0, 2).astype(compute_dtype)
    wv_r = wv.reshape(D, num_heads, hd).transpose(1, 0, 2).astype(compute_dtype)
    wo_r = wo.reshape(num_heads, hd, D).astype(compute_dtype)                     # (H, hd, D)
    w1_c = w1.astype(compute_dtype)                                               # (D, 4D)
    w2_c = w2.astype(compute_dtype)                                               # (4D, D)

    def const(shape):
        # Constant-index full block: DMA'd once, stays resident across the grid.
        return pl.BlockSpec(shape, lambda b, qi: (0,) * len(shape))

    in_specs = [
        pl.BlockSpec((1, TQ, D), lambda b, qi: (b, qi, 0)),   # x  (query tile / residual)
        pl.BlockSpec((1, T, D), lambda b, qi: (b, 0, 0)),     # x  (full, for K/V)
        const((1, D)), const((1, D)),                         # ln1 scale / shift
        const((num_heads, D, hd)),                            # Wq (head-major, bf16)
        const((num_heads, D, hd)),                            # Wk
        const((num_heads, D, hd)),                            # Wv
        const((num_heads, hd, D)), const((1, D)),             # Wo, bo
        const((1, D)), const((1, D)),                         # ln2 scale / shift
        const((D, H4)), const((1, H4)),                       # W1, b1
        const((H4, D)), const((1, D)),                        # W2, b2
    ]

    kernel = functools.partial(transformer_block_kernel, num_heads)
    return pl.pallas_call(
        kernel,
        out_shape=jax.ShapeDtypeStruct((B, T, D), x.dtype),
        grid_spec=pltpu.PrefetchScalarGridSpec(
            num_scalar_prefetch=0,
            grid=(B, NQ),
            in_specs=in_specs,
            out_specs=pl.BlockSpec((1, TQ, D), lambda b, qi: (b, qi, 0)),
        ),
        compiler_params=pltpu.CompilerParams(
            dimension_semantics=("parallel", "parallel"),
            vmem_limit_bytes=48 * 1024 * 1024,
        ),
    )(x, x, ln1_s, ln1_b, wq_r, wk_r, wv_r, wo_r, bo,
      ln2_s, ln2_b, w1_c, b1, w2_c, b2)


# ---------------------------------------------------------------------------
# Pure-JAX f32 reference (mirrors the PyTorch forward) for correctness check
# ---------------------------------------------------------------------------
def transformer_block_ref(x, params, num_heads):
    (ln1_s, ln1_b, wq, wk, wv, wo, bo, ln2_s, ln2_b, w1, b1, w2, b2) = params
    B, T, D = x.shape
    hd = D // num_heads

    def ln(z, s, b):
        m = z.mean(-1, keepdims=True)
        v = ((z - m) ** 2).mean(-1, keepdims=True)
        return s * (z - m) / jnp.sqrt(v + 1e-5) + b

    xn = ln(x, ln1_s, ln1_b)
    q = (xn @ wq).reshape(B, T, num_heads, hd).transpose(0, 2, 1, 3)
    k = (xn @ wk).reshape(B, T, num_heads, hd).transpose(0, 2, 1, 3)
    v = (xn @ wv).reshape(B, T, num_heads, hd).transpose(0, 2, 1, 3)
    s = q @ k.transpose(0, 1, 3, 2)
    mask = jnp.triu(jnp.ones((T, T), bool), 1)
    s = jnp.where(mask, -jnp.inf, s) / math.sqrt(hd)
    p = jax.nn.softmax(s, axis=-1)
    ctx = (p @ v).transpose(0, 2, 1, 3).reshape(B, T, D)
    x1 = x + (ctx @ wo + bo)
    x2n = ln(x1, ln2_s, ln2_b)
    h1 = _gelu_tanh(x2n @ w1 + b1)
    return x1 + (h1 @ w2 + b2)


# ---------------------------------------------------------------------------
if __name__ == "__main__":
    # Small config consistent with the module: emb_dim=32, context_length=8, n_heads=4
    B, T, D, NH = 2, 8, 32, 4
    H4 = 4 * D

    key = jax.random.PRNGKey(0)
    ks = jax.random.split(key, 9)

    def u(k, shape, fan_in):
        bound = 1.0 / math.sqrt(fan_in)
        return jax.random.uniform(k, shape, jnp.float32, -bound, bound)

    # Parameters (linear weights already transposed to (in, out) layout).
    ln1_s = jnp.ones((1, D), jnp.float32)
    ln1_b = jnp.zeros((1, D), jnp.float32)
    wq = u(ks[0], (D, D), D)          # qkv_bias=False
    wk = u(ks[1], (D, D), D)
    wv = u(ks[2], (D, D), D)
    wo = u(ks[3], (D, D), D)
    bo = u(ks[4], (1, D), D)
    ln2_s = jnp.ones((1, D), jnp.float32)
    ln2_b = jnp.zeros((1, D), jnp.float32)
    w1 = u(ks[5], (D, H4), D)
    b1 = u(ks[6], (1, H4), D)
    w2 = u(ks[7], (H4, D), H4)
    b2 = jnp.zeros((1, D), jnp.float32)

    params = (ln1_s, ln1_b, wq, wk, wv, wo, bo, ln2_s, ln2_b, w1, b1, w2, b2)

    x = jax.random.normal(ks[8], (B, T, D), jnp.float32)

    out = transformer_block(x, params, NH)
    out = jax.block_until_ready(out)

    ref = transformer_block_ref(x, params, NH)
    assert out.shape == (B, T, D)
    # bf16 matmul operands with f32 accumulation -> relaxed tolerance vs f32 ref.
    assert jnp.allclose(out, ref, atol=3e-2, rtol=3e-2), (
        "mismatch vs reference, max abs err = %f" % float(jnp.max(jnp.abs(out - ref))))

    print("KERNEL_OK")
</pallas_src>

<mosaic_0001>
module attributes {stable_mosaic.version = 11 : i64} {
  func.func @transformer_block_kernel(%arg0: i32, %arg1: i32, %arg2: memref<1x8x32xf32, #tpu.memory_space<vmem>>, %arg3: memref<1x8x32xf32, #tpu.memory_space<vmem>>, %arg4: memref<1x32xf32, #tpu.memory_space<vmem>>, %arg5: memref<1x32xf32, #tpu.memory_space<vmem>>, %arg6: memref<4x32x8xbf16, #tpu.memory_space<vmem>>, %arg7: memref<4x32x8xbf16, #tpu.memory_space<vmem>>, %arg8: memref<4x32x8xbf16, #tpu.memory_space<vmem>>, %arg9: memref<4x8x32xbf16, #tpu.memory_space<vmem>>, %arg10: memref<1x32xf32, #tpu.memory_space<vmem>>, %arg11: memref<1x32xf32, #tpu.memory_space<vmem>>, %arg12: memref<1x32xf32, #tpu.memory_space<vmem>>, %arg13: memref<32x128xbf16, #tpu.memory_space<vmem>>, %arg14: memref<1x128xf32, #tpu.memory_space<vmem>>, %arg15: memref<128x32xbf16, #tpu.memory_space<vmem>>, %arg16: memref<1x32xf32, #tpu.memory_space<vmem>>, %arg17: memref<1x8x32xf32, #tpu.memory_space<vmem>>) attributes {dimension_semantics = [#tpu.dimension_semantics<parallel>, #tpu.dimension_semantics<parallel>], iteration_bounds = array<i64: 2, 1>, scalar_prefetch = 0 : i64, scratch_operands = 0 : i64, tpu.core_type = #tpu.core_type<tc>, window_params = [{transform_indices = @transform_0, window_bounds = array<i64: 1, 8, 32>}, {transform_indices = @transform_1, window_bounds = array<i64: 1, 8, 32>}, {pipeline_mode = #tpu.pipeline_mode<synchronous>, transform_indices = @transform_2, window_bounds = array<i64: 1, 32>}, {pipeline_mode = #tpu.pipeline_mode<synchronous>, transform_indices = @transform_3, window_bounds = array<i64: 1, 32>}, {pipeline_mode = #tpu.pipeline_mode<synchronous>, transform_indices = @transform_4, window_bounds = array<i64: 4, 32, 8>}, {pipeline_mode = #tpu.pipeline_mode<synchronous>, transform_indices = @transform_5, window_bounds = array<i64: 4, 32, 8>}, {pipeline_mode = #tpu.pipeline_mode<synchronous>, transform_indices = @transform_6, window_bounds = array<i64: 4, 32, 8>}, {pipeline_mode = #tpu.pipeline_mode<synchronous>, transform_indices = @transform_7, window_bounds = array<i64: 4, 8, 32>}, {pipeline_mode = #tpu.pipeline_mode<synchronous>, transform_indices = @transform_8, window_bounds = array<i64: 1, 32>}, {pipeline_mode = #tpu.pipeline_mode<synchronous>, transform_indices = @transform_9, window_bounds = array<i64: 1, 32>}, {pipeline_mode = #tpu.pipeline_mode<synchronous>, transform_indices = @transform_10, window_bounds = array<i64: 1, 32>}, {pipeline_mode = #tpu.pipeline_mode<synchronous>, transform_indices = @transform_11, window_bounds = array<i64: 32, 128>}, {pipeline_mode = #tpu.pipeline_mode<synchronous>, transform_indices = @transform_12, window_bounds = array<i64: 1, 128>}, {pipeline_mode = #tpu.pipeline_mode<synchronous>, transform_indices = @transform_13, window_bounds = array<i64: 128, 32>}, {pipeline_mode = #tpu.pipeline_mode<synchronous>, transform_indices = @transform_14, window_bounds = array<i64: 1, 32>}, {transform_indices = @transform_15, window_bounds = array<i64: 1, 8, 32>}]} {
    %c0 = arith.constant 0 : index
    %c0_0 = arith.constant 0 : index
    %c0_1 = arith.constant 0 : index
    %0 = vector.load %arg2[%c0, %c0_0, %c0_1] : memref<1x8x32xf32, #tpu.memory_space<vmem>>, vector<1x8x32xf32>
    %1 = vector.shape_cast %0 : vector<1x8x32xf32> to vector<8x32xf32>
    %c0_2 = arith.constant 0 : index
    %c0_3 = arith.constant 0 : index
    %c0_4 = arith.constant 0 : index
    %2 = vector.load %arg3[%c0_2, %c0_3, %c0_4] : memref<1x8x32xf32, #tpu.memory_space<vmem>>, vector<1x8x32xf32>
    %3 = vector.shape_cast %2 : vector<1x8x32xf32> to vector<8x32xf32>
    %c0_5 = arith.constant 0 : index
    %c0_6 = arith.constant 0 : index
    %4 = vector.load %arg4[%c0_5, %c0_6] : memref<1x32xf32, #tpu.memory_space<vmem>>, vector<1x32xf32>
    %c0_7 = arith.constant 0 : index
    %c0_8 = arith.constant 0 : index
    %5 = vector.load %arg5[%c0_7, %c0_8] : memref<1x32xf32, #tpu.memory_space<vmem>>, vector<1x32xf32>
    %cst = arith.constant dense<0.000000e+00> : vector<8xf32>
    %6 = vector.multi_reduction <add>, %1, %cst [1] : vector<8x32xf32> to vector<8xf32>
    %7 = vector.shape_cast %6 : vector<8xf32> to vector<8x1xf32>
    %cst_9 = arith.constant 3.200000e+01 : f32
    %8 = vector.broadcast %cst_9 : f32 to vector<8x1xf32>
    %9 = arith.divf %7, %8 : vector<8x1xf32>
    %10 = vector.broadcast %9 : vector<8x1xf32> to vector<8x32xf32>
    %11 = arith.subf %1, %10 : vector<8x32xf32>
    %12 = arith.mulf %11, %11 : vector<8x32xf32>
    %cst_10 = arith.constant dense<0.000000e+00> : vector<8xf32>
    %13 = vector.multi_reduction <add>, %12, %cst_10 [1] : vector<8x32xf32> to vector<8xf32>
    %14 = vector.shape_cast %13 : vector<8xf32> to vector<8x1xf32>
    %cst_11 = arith.constant 3.200000e+01 : f32
    %15 = vector.broadcast %cst_11 : f32 to vector<8x1xf32>
    %16 = arith.divf %14, %15 : vector<8x1xf32>
    %17 = vector.broadcast %9 : vector<8x1xf32> to vector<8x32xf32>
    %18 = arith.subf %1, %17 : vector<8x32xf32>
    %cst_12 = arith.constant 9.99999974E-6 : f32
    %19 = vector.broadcast %cst_12 : f32 to vector<8x1xf32>
    %20 = arith.addf %16, %19 : vector<8x1xf32>
    %21 = math.rsqrt %20 : vector<8x1xf32>
    %22 = vector.broadcast %21 : vector<8x1xf32> to vector<8x32xf32>
    %23 = arith.mulf %18, %22 : vector<8x32xf32>
    %24 = vector.broadcast %4 : vector<1x32xf32> to vector<8x32xf32>
    %25 = arith.mulf %24, %23 : vector<8x32xf32>
    %26 = vector.broadcast %5 : vector<1x32xf32> to vector<8x32xf32>
    %27 = arith.addf %25, %26 : vector<8x32xf32>
    %28 = arith.truncf %27 : vector<8x32xf32> to vector<8x32xbf16>
    %c0_13 = arith.constant 0 : index
    %c0_14 = arith.constant 0 : index
    %29 = vector.load %arg4[%c0_13, %c0_14] : memref<1x32xf32, #tpu.memory_space<vmem>>, vector<1x32xf32>
    %c0_15 = arith.constant 0 : index
    %c0_16 = arith.constant 0 : index
    %30 = vector.load %arg5[%c0_15, %c0_16] : memref<1x32xf32, #tpu.memory_space<vmem>>, vector<1x32xf32>
    %cst_17 = arith.constant dense<0.000000e+00> : vector<8xf32>
    %31 = vector.multi_reduction <add>, %3, %cst_17 [1] : vector<8x32xf32> to vector<8xf32>
    %32 = vector.shape_cast %31 : vector<8xf32> to vector<8x1xf32>
    %cst_18 = arith.constant 3.200000e+01 : f32
    %33 = vector.broadcast %cst_18 : f32 to vector<8x1xf32>
    %34 = arith.divf %32, %33 : vector<8x1xf32>
    %35 = vector.broadcast %34 : vector<8x1xf32> to vector<8x32xf32>
    %36 = arith.subf %3, %35 : vector<8x32xf32>
    %37 = arith.mulf %36, %36 : vector<8x32xf32>
    %cst_19 = arith.constant dense<0.000000e+00> : vector<8xf32>
    %38 = vector.multi_reduction <add>, %37, %cst_19 [1] : vector<8x32xf32> to vector<8xf32>
    %39 = vector.shape_cast %38 : vector<8xf32> to vector<8x1xf32>
    %cst_20 = arith.constant 3.200000e+01 : f32
    %40 = vector.broadcast %cst_20 : f32 to vector<8x1xf32>
    %41 = arith.divf %39, %40 : vector<8x1xf32>
    %42 = vector.broadcast %34 : vector<8x1xf32> to vector<8x32xf32>
    %43 = arith.subf %3, %42 : vector<8x32xf32>
    %cst_21 = arith.constant 9.99999974E-6 : f32
    %44 = vector.broadcast %cst_21 : f32 to vector<8x1xf32>
    %45 = arith.addf %41, %44 : vector<8x1xf32>
    %46 = math.rsqrt %45 : vector<8x1xf32>
    %47 = vector.broadcast %46 : vector<8x1xf32> to vector<8x32xf32>
    %48 = arith.mulf %43, %47 : vector<8x32xf32>
    %49 = vector.broadcast %29 : vector<1x32xf32> to vector<8x32xf32>
    %50 = arith.mulf %49, %48 : vector<8x32xf32>
    %51 = vector.broadcast %30 : vector<1x32xf32> to vector<8x32xf32>
    %52 = arith.addf %50, %51 : vector<8x32xf32>
    %53 = arith.truncf %52 : vector<8x32xf32> to vector<8x32xbf16>
    %54 = vector.shape_cast %28 : vector<8x32xbf16> to vector<1x8x32xbf16>
    %55 = vector.shape_cast %54 : vector<1x8x32xbf16> to vector<1x8x32xbf16>
    %56 = vector.broadcast %55 : vector<1x8x32xbf16> to vector<4x8x32xbf16>
    %57 = vector.shape_cast %53 : vector<8x32xbf16> to vector<1x8x32xbf16>
    %58 = vector.shape_cast %57 : vector<1x8x32xbf16> to vector<1x8x32xbf16>
    %59 = vector.broadcast %58 : vector<1x8x32xbf16> to vector<4x8x32xbf16>
    %c0_22 = arith.constant 0 : index
    %c0_23 = arith.constant 0 : index
    %c0_24 = arith.constant 0 : index
    %60 = vector.load %arg6[%c0_22, %c0_23, %c0_24] : memref<4x32x8xbf16, #tpu.memory_space<vmem>>, vector<4x32x8xbf16>
    "tpu.trace_start"() <{level = 10 : i32, message = "htd,hdk->htk"}> : () -> ()
    %cst_25 = arith.constant dense<0.000000e+00> : vector<4x8x8xf32>
    %61 = tpu.matmul %56, %60, %cst_25 {dimension_numbers = #tpu.dot_dimension_numbers<[2], [1], [1], [2], [0, 0, 0, 1, 1, 2], [0], [0]>} : vector<4x8x32xbf16>, vector<4x32x8xbf16>, vector<4x8x8xf32> -> vector<4x8x8xf32>
    "tpu.trace_stop"() : () -> ()
    %c0_26 = arith.constant 0 : index
    %c0_27 = arith.constant 0 : index
    %c0_28 = arith.constant 0 : index
    %62 = vector.load %arg7[%c0_26, %c0_27, %c0_28] : memref<4x32x8xbf16, #tpu.memory_space<vmem>>, vector<4x32x8xbf16>
    "tpu.trace_start"() <{level = 10 : i32, message = "htd,hdk->htk"}> : () -> ()
    %cst_29 = arith.constant dense<0.000000e+00> : vector<4x8x8xf32>
    %63 = tpu.matmul %59, %62, %cst_29 {dimension_numbers = #tpu.dot_dimension_numbers<[2], [1], [1], [2], [0, 0, 0, 1, 1, 2], [0], [0]>} : vector<4x8x32xbf16>, vector<4x32x8xbf16>, vector<4x8x8xf32> -> vector<4x8x8xf32>
    "tpu.trace_stop"() : () -> ()
    %c0_30 = arith.constant 0 : index
    %c0_31 = arith.constant 0 : index
    %c0_32 = arith.constant 0 : index
    %64 = vector.load %arg8[%c0_30, %c0_31, %c0_32] : memref<4x32x8xbf16, #tpu.memory_space<vmem>>, vector<4x32x8xbf16>
    "tpu.trace_start"() <{level = 10 : i32, message = "htd,hdk->htk"}> : () -> ()
    %cst_33 = arith.constant dense<0.000000e+00> : vector<4x8x8xf32>
    %65 = tpu.matmul %59, %64, %cst_33 {dimension_numbers = #tpu.dot_dimension_numbers<[2], [1], [1], [2], [0, 0, 0, 1, 1, 2], [0], [0]>} : vector<4x8x32xbf16>, vector<4x32x8xbf16>, vector<4x8x8xf32> -> vector<4x8x8xf32>
    "tpu.trace_stop"() : () -> ()
    %cst_34 = arith.constant 0.353553385 : f32
    %66 = vector.broadcast %cst_34 : f32 to vector<4x8x8xf32>
    %67 = arith.mulf %61, %66 : vector<4x8x8xf32>
    %68 = arith.truncf %67 : vector<4x8x8xf32> to vector<4x8x8xbf16>
    %69 = arith.truncf %63 : vector<4x8x8xf32> to vector<4x8x8xbf16>
    %70 = arith.truncf %65 : vector<4x8x8xf32> to vector<4x8x8xbf16>
    "tpu.trace_start"() <{level = 10 : i32, message = "hqd,hkd->hqk"}> : () -> ()
    %cst_35 = arith.constant dense<0.000000e+00> : vector<4x8x8xf32>
    %71 = tpu.matmul %68, %69, %cst_35 {dimension_numbers = #tpu.dot_dimension_numbers<[2], [2], [1], [1], [0, 0, 0, 1, 1, 1], [0], [0]>} : vector<4x8x8xbf16>, vector<4x8x8xbf16>, vector<4x8x8xf32> -> vector<4x8x8xf32>
    "tpu.trace_stop"() : () -> ()
    %72 = tpu.iota {dimensions = array<i32: 1>} : vector<4x8x8xi32>
    %c8_i32 = arith.constant 8 : i32
    %73 = arith.muli %arg1, %c8_i32 : i32
    %74 = vector.broadcast %73 : i32 to vector<4x8x8xi32>
    %75 = arith.addi %72, %74 : vector<4x8x8xi32>
    %76 = tpu.iota {dimensions = array<i32: 2>} : vector<4x8x8xi32>
    %77 = arith.cmpi sgt, %76, %75 : vector<4x8x8xi32>
    %cst_36 = arith.constant 0xFF800000 : f32
    %78 = vector.broadcast %cst_36 : f32 to vector<4x8x8xf32>
    %79 = arith.select %77, %78, %71 : vector<4x8x8xi1>, vector<4x8x8xf32>
    %cst_37 = arith.constant dense<0xFF800000> : vector<4x8xf32>
    %80 = vector.multi_reduction <maximumf>, %79, %cst_37 [2] : vector<4x8x8xf32> to vector<4x8xf32>
    %81 = vector.shape_cast %80 : vector<4x8xf32> to vector<4x8x1xf32>
    %82 = vector.broadcast %81 : vector<4x8x1xf32> to vector<4x8x8xf32>
    %83 = arith.subf %79, %82 : vector<4x8x8xf32>
    %84 = math.exp %83 : vector<4x8x8xf32>
    %cst_38 = arith.constant dense<0.000000e+00> : vector<4x8xf32>
    %85 = vector.multi_reduction <add>, %84, %cst_38 [2] : vector<4x8x8xf32> to vector<4x8xf32>
    %86 = vector.shape_cast %85 : vector<4x8xf32> to vector<4x8x1xf32>
    %87 = tpu.reciprocal %86 {approx = true} : vector<4x8x1xf32> -> vector<4x8x1xf32>
    %88 = vector.broadcast %87 : vector<4x8x1xf32> to vector<4x8x8xf32>
    %89 = arith.mulf %84, %88 : vector<4x8x8xf32>
    %90 = arith.truncf %89 : vector<4x8x8xf32> to vector<4x8x8xbf16>
    "tpu.trace_start"() <{level = 10 : i32, message = "hqk,hkd->hqd"}> : () -> ()
    %cst_39 = arith.constant dense<0.000000e+00> : vector<4x8x8xf32>
    %91 = tpu.matmul %90, %70, %cst_39 {dimension_numbers = #tpu.dot_dimension_numbers<[2], [1], [1], [2], [0, 0, 0, 1, 1, 2], [0], [0]>} : vector<4x8x8xbf16>, vector<4x8x8xbf16>, vector<4x8x8xf32> -> vector<4x8x8xf32>
    "tpu.trace_stop"() : () -> ()
    %92 = arith.truncf %91 : vector<4x8x8xf32> to vector<4x8x8xbf16>
    %c0_40 = arith.constant 0 : index
    %c0_41 = arith.constant 0 : index
    %c0_42 = arith.constant 0 : index
    %93 = vector.load %arg9[%c0_40, %c0_41, %c0_42] : memref<4x8x32xbf16, #tpu.memory_space<vmem>>, vector<4x8x32xbf16>
    "tpu.trace_start"() <{level = 10 : i32, message = "hqd,hdo->hqo"}> : () -> ()
    %cst_43 = arith.constant dense<0.000000e+00> : vector<4x8x32xf32>
    %94 = tpu.matmul %92, %93, %cst_43 {dimension_numbers = #tpu.dot_dimension_numbers<[2], [1], [1], [2], [0, 0, 0, 1, 1, 2], [0], [0]>} : vector<4x8x8xbf16>, vector<4x8x32xbf16>, vector<4x8x32xf32> -> vector<4x8x32xf32>
    "tpu.trace_stop"() : () -> ()
    %cst_44 = arith.constant dense<0.000000e+00> : vector<8x32xf32>
    %95 = vector.multi_reduction <add>, %94, %cst_44 [0] : vector<4x8x32xf32> to vector<8x32xf32>
    %c0_45 = arith.constant 0 : index
    %c0_46 = arith.constant 0 : index
    %96 = vector.load %arg10[%c0_45, %c0_46] : memref<1x32xf32, #tpu.memory_space<vmem>>, vector<1x32xf32>
    %97 = vector.broadcast %96 : vector<1x32xf32> to vector<8x32xf32>
    %98 = arith.addf %95, %97 : vector<8x32xf32>
    %99 = arith.addf %1, %98 : vector<8x32xf32>
    %c0_47 = arith.constant 0 : index
    %c0_48 = arith.constant 0 : index
    %100 = vector.load %arg11[%c0_47, %c0_48] : memref<1x32xf32, #tpu.memory_space<vmem>>, vector<1x32xf32>
    %c0_49 = arith.constant 0 : index
    %c0_50 = arith.constant 0 : index
    %101 = vector.load %arg12[%c0_49, %c0_50] : memref<1x32xf32, #tpu.memory_space<vmem>>, vector<1x32xf32>
    %cst_51 = arith.constant dense<0.000000e+00> : vector<8xf32>
    %102 = vector.multi_reduction <add>, %99, %cst_51 [1] : vector<8x32xf32> to vector<8xf32>
    %103 = vector.shape_cast %102 : vector<8xf32> to vector<8x1xf32>
    %cst_52 = arith.constant 3.200000e+01 : f32
    %104 = vector.broadcast %cst_52 : f32 to vector<8x1xf32>
    %105 = arith.divf %103, %104 : vector<8x1xf32>
    %106 = vector.broadcast %105 : vector<8x1xf32> to vector<8x32xf32>
    %107 = arith.subf %99, %106 : vector<8x32xf32>
    %108 = arith.mulf %107, %107 : vector<8x32xf32>
    %cst_53 = arith.constant dense<0.000000e+00> : vector<8xf32>
    %109 = vector.multi_reduction <add>, %108, %cst_53 [1] : vector<8x32xf32> to vector<8xf32>
    %110 = vector.shape_cast %109 : vector<8xf32> to vector<8x1xf32>
    %cst_54 = arith.constant 3.200000e+01 : f32
    %111 = vector.broadcast %cst_54 : f32 to vector<8x1xf32>
    %112 = arith.divf %110, %111 : vector<8x1xf32>
    %113 = vector.broadcast %105 : vector<8x1xf32> to vector<8x32xf32>
    %114 = arith.subf %99, %113 : vector<8x32xf32>
    %cst_55 = arith.constant 9.99999974E-6 : f32
    %115 = vector.broadcast %cst_55 : f32 to vector<8x1xf32>
    %116 = arith.addf %112, %115 : vector<8x1xf32>
    %117 = math.rsqrt %116 : vector<8x1xf32>
    %118 = vector.broadcast %117 : vector<8x1xf32> to vector<8x32xf32>
    %119 = arith.mulf %114, %118 : vector<8x32xf32>
    %120 = vector.broadcast %100 : vector<1x32xf32> to vector<8x32xf32>
    %121 = arith.mulf %120, %119 : vector<8x32xf32>
    %122 = vector.broadcast %101 : vector<1x32xf32> to vector<8x32xf32>
    %123 = arith.addf %121, %122 : vector<8x32xf32>
    %124 = arith.truncf %123 : vector<8x32xf32> to vector<8x32xbf16>
    %c0_56 = arith.constant 0 : index
    %c0_57 = arith.constant 0 : index
    %125 = vector.load %arg13[%c0_56, %c0_57] : memref<32x128xbf16, #tpu.memory_space<vmem>>, vector<32x128xbf16>
    %cst_58 = arith.constant dense<0.000000e+00> : vector<8x128xf32>
    %126 = tpu.matmul %124, %125, %cst_58 {dimension_numbers = #tpu.dot_dimension_numbers<[1], [0], [0], [1], [0, 0, 1, 1], [], []>} : vector<8x32xbf16>, vector<32x128xbf16>, vector<8x128xf32> -> vector<8x128xf32>
    %c0_59 = arith.constant 0 : index
    %c0_60 = arith.constant 0 : index
    %127 = vector.load %arg14[%c0_59, %c0_60] : memref<1x128xf32, #tpu.memory_space<vmem>>, vector<1x128xf32>
    %128 = vector.broadcast %127 : vector<1x128xf32> to vector<8x128xf32>
    %129 = arith.addf %126, %128 : vector<8x128xf32>
    %cst_61 = arith.constant 5.000000e-01 : f32
    %130 = vector.broadcast %cst_61 : f32 to vector<8x128xf32>
    %131 = arith.mulf %130, %129 : vector<8x128xf32>
    %132 = arith.mulf %129, %129 : vector<8x128xf32>
    %133 = arith.mulf %129, %132 : vector<8x128xf32>
    %cst_62 = arith.constant 4.471500e-02 : f32
    %134 = vector.broadcast %cst_62 : f32 to vector<8x128xf32>
    %135 = arith.mulf %134, %133 : vector<8x128xf32>
    %136 = arith.addf %129, %135 : vector<8x128xf32>
    %cst_63 = arith.constant 0.797884583 : f32
    %137 = vector.broadcast %cst_63 : f32 to vector<8x128xf32>
    %138 = arith.mulf %137, %136 : vector<8x128xf32>
    %139 = math.tanh %138 : vector<8x128xf32>
    %cst_64 = arith.constant 1.000000e+00 : f32
    %140 = vector.broadcast %cst_64 : f32 to vector<8x128xf32>
    %141 = arith.addf %140, %139 : vector<8x128xf32>
    %142 = arith.mulf %131, %141 : vector<8x128xf32>
    %143 = arith.truncf %142 : vector<8x128xf32> to vector<8x128xbf16>
    %c0_65 = arith.constant 0 : index
    %c0_66 = arith.constant 0 : index
    %144 = vector.load %arg15[%c0_65, %c0_66] : memref<128x32xbf16, #tpu.memory_space<vmem>>, vector<128x32xbf16>
    %cst_67 = arith.constant dense<0.000000e+00> : vector<8x32xf32>
    %145 = tpu.matmul %143, %144, %cst_67 {dimension_numbers = #tpu.dot_dimension_numbers<[1], [0], [0], [1], [0, 0, 1, 1], [], []>} : vector<8x128xbf16>, vector<128x32xbf16>, vector<8x32xf32> -> vector<8x32xf32>
    %c0_68 = arith.constant 0 : index
    %c0_69 = arith.constant 0 : index
    %146 = vector.load %arg16[%c0_68, %c0_69] : memref<1x32xf32, #tpu.memory_space<vmem>>, vector<1x32xf32>
    %147 = vector.broadcast %146 : vector<1x32xf32> to vector<8x32xf32>
    %148 = arith.addf %145, %147 : vector<8x32xf32>
    %149 = arith.addf %99, %148 : vector<8x32xf32>
    %c0_70 = arith.constant 0 : index
    %c0_71 = arith.constant 0 : index
    %c0_72 = arith.constant 0 : index
    %150 = vector.load %arg17[%c0_70, %c0_71, %c0_72] : memref<1x8x32xf32, #tpu.memory_space<vmem>>, vector<1x8x32xf32>
    %151 = vector.shape_cast %150 : vector<1x8x32xf32> to vector<8x32xf32>
    %152 = vector.shape_cast %149 : vector<8x32xf32> to vector<1x8x32xf32>
    tpu.vector_store %arg17[%c0_70, %c0_71, %c0_72], %152 {strides = array<i32>} : memref<1x8x32xf32, #tpu.memory_space<vmem>>, vector<1x8x32xf32>,
    return
  }
  func.func @transform_0(%arg0: i32, %arg1: i32) -> (i32, i32, i32) {
    %c0_i32 = arith.constant 0 : i32
    %c0_i32_0 = arith.constant 0 : i32
    return %arg0, %arg1, %c0_i32 : i32, i32, i32
  }
  func.func @transform_1(%arg0: i32, %arg1: i32) -> (i32, i32, i32) {
    %c0_i32 = arith.constant 0 : i32
    %c0_i32_0 = arith.constant 0 : i32
    %c0_i32_1 = arith.constant 0 : i32
    return %arg0, %c0_i32, %c0_i32_0 : i32, i32, i32
  }
  func.func @transform_2(%arg0: i32, %arg1: i32) -> (i32, i32) {
    %c0_i32 = arith.constant 0 : i32
    %c0_i32_0 = arith.constant 0 : i32
    %c0_i32_1 = arith.constant 0 : i32
    return %c0_i32, %c0_i32_0 : i32, i32
  }
  func.func @transform_3(%arg0: i32, %arg1: i32) -> (i32, i32) {
    %c0_i32 = arith.constant 0 : i32
    %c0_i32_0 = arith.constant 0 : i32
    %c0_i32_1 = arith.constant 0 : i32
    return %c0_i32, %c0_i32_0 : i32, i32
  }
  func.func @transform_4(%arg0: i32, %arg1: i32) -> (i32, i32, i32) {
    %c0_i32 = arith.constant 0 : i32
    %c0_i32_0 = arith.constant 0 : i32
    %c0_i32_1 = arith.constant 0 : i32
    %c0_i32_2 = arith.constant 0 : i32
    return %c0_i32, %c0_i32_0, %c0_i32_1 : i32, i32, i32
  }
  func.func @transform_5(%arg0: i32, %arg1: i32) -> (i32, i32, i32) {
    %c0_i32 = arith.constant 0 : i32
    %c0_i32_0 = arith.constant 0 : i32
    %c0_i32_1 = arith.constant 0 : i32
    %c0_i32_2 = arith.constant 0 : i32
    return %c0_i32, %c0_i32_0, %c0_i32_1 : i32, i32, i32
  }
  func.func @transform_6(%arg0: i32, %arg1: i32) -> (i32, i32, i32) {
    %c0_i32 = arith.constant 0 : i32
    %c0_i32_0 = arith.constant 0 : i32
    %c0_i32_1 = arith.constant 0 : i32
    %c0_i32_2 = arith.constant 0 : i32
    return %c0_i32, %c0_i32_0, %c0_i32_1 : i32, i32, i32
  }
  func.func @transform_7(%arg0: i32, %arg1: i32) -> (i32, i32, i32) {
    %c0_i32 = arith.constant 0 : i32
    %c0_i32_0 = arith.constant 0 : i32
    %c0_i32_1 = arith.constant 0 : i32
    %c0_i32_2 = arith.constant 0 : i32
    return %c0_i32, %c0_i32_0, %c0_i32_1 : i32, i32, i32
  }
  func.func @transform_8(%arg0: i32, %arg1: i32) -> (i32, i32) {
    %c0_i32 = arith.constant 0 : i32
    %c0_i32_0 = arith.constant 0 : i32
    %c0_i32_1 = arith.constant 0 : i32
    return %c0_i32, %c0_i32_0 : i32, i32
  }
  func.func @transform_9(%arg0: i32, %arg1: i32) -> (i32, i32) {
    %c0_i32 = arith.constant 0 : i32
    %c0_i32_0 = arith.constant 0 : i32
    %c0_i32_1 = arith.constant 0 : i32
    return %c0_i32, %c0_i32_0 : i32, i32
  }
  func.func @transform_10(%arg0: i32, %arg1: i32) -> (i32, i32) {
    %c0_i32 = arith.constant 0 : i32
    %c0_i32_0 = arith.constant 0 : i32
    %c0_i32_1 = arith.constant 0 : i32
    return %c0_i32, %c0_i32_0 : i32, i32
  }
  func.func @transform_11(%arg0: i32, %arg1: i32) -> (i32, i32) {
    %c0_i32 = arith.constant 0 : i32
    %c0_i32_0 = arith.constant 0 : i32
    %c0_i32_1 = arith.constant 0 : i32
    return %c0_i32, %c0_i32_0 : i32, i32
  }
  func.func @transform_12(%arg0: i32, %arg1: i32) -> (i32, i32) {
    %c0_i32 = arith.constant 0 : i32
    %c0_i32_0 = arith.constant 0 : i32
    %c0_i32_1 = arith.constant 0 : i32
    return %c0_i32, %c0_i32_0 : i32, i32
  }
  func.func @transform_13(%arg0: i32, %arg1: i32) -> (i32, i32) {
    %c0_i32 = arith.constant 0 : i32
    %c0_i32_0 = arith.constant 0 : i32
    %c0_i32_1 = arith.constant 0 : i32
    return %c0_i32, %c0_i32_0 : i32, i32
  }
  func.func @transform_14(%arg0: i32, %arg1: i32) -> (i32, i32) {
    %c0_i32 = arith.constant 0 : i32
    %c0_i32_0 = arith.constant 0 : i32
    %c0_i32_1 = arith.constant 0 : i32
    return %c0_i32, %c0_i32_0 : i32, i32
  }
  func.func @transform_15(%arg0: i32, %arg1: i32) -> (i32, i32, i32) {
    %c0_i32 = arith.constant 0 : i32
    %c0_i32_0 = arith.constant 0 : i32
    return %arg0, %arg1, %c0_i32 : i32, i32, i32
  }
}

</mosaic_0001>

<llo_original>
// kernel: tpu_custom_call.1
$region0: #{tpu_custom_call.1}
  #allocation0 [shape = 'u32[]', space=smem, size = 0x4, offset = 0x4, fixed_abs, tag = 'smem constant byte address 0x4 - core index']
  #allocation1 [shape = 'u32[144,128]{1,0:T(1,128)}', space=vmem, size = 0x12000, scoped, tag = 'internal scratch']
  %s0 = inlined_call_operand.vmem [shape: f32[2,8,32], index: 0, kind: input, shape index: {}]
  %s1 = inlined_call_operand.vmem [shape: f32[2,8,32], index: 1, kind: input, shape index: {}]
  %s2 = inlined_call_operand.vmem [shape: f32[1,32], index: 2, kind: input, shape index: {}]
  %s3 = inlined_call_operand.vmem [shape: f32[1,32], index: 3, kind: input, shape index: {}]
  %s4 = inlined_call_operand.vmem [shape: bf16[4,32,8], index: 4, kind: input, shape index: {}]
  %s5 = inlined_call_operand.vmem [shape: bf16[4,32,8], index: 5, kind: input, shape index: {}]
  %s6 = inlined_call_operand.vmem [shape: bf16[4,32,8], index: 6, kind: input, shape index: {}]
  %s7 = inlined_call_operand.vmem [shape: bf16[4,8,32], index: 7, kind: input, shape index: {}]
  %s8 = inlined_call_operand.vmem [shape: f32[1,32], index: 8, kind: input, shape index: {}]
  %s9 = inlined_call_operand.vmem [shape: f32[1,32], index: 9, kind: input, shape index: {}]
  %s10 = inlined_call_operand.vmem [shape: f32[1,32], index: 10, kind: input, shape index: {}]
  %s11 = inlined_call_operand.vmem [shape: bf16[32,128], index: 11, kind: input, shape index: {}]
  %s12 = inlined_call_operand.vmem [shape: f32[1,128], index: 12, kind: input, shape index: {}]
  %s13 = inlined_call_operand.vmem [shape: bf16[128,32], index: 13, kind: input, shape index: {}]
  %s14 = inlined_call_operand.vmem [shape: f32[1,32], index: 14, kind: input, shape index: {}]
  %s15 = inlined_call_operand.hbm [shape: f32[2,8,32], index: 15, kind: output, shape index: {}]
  %s16 = sld [smem:[#allocation0]]
  $region93: #{tpu_custom_call.1} parent=0
    _
  %s18 = ssub.s32 1, %s16
  %s19 = scalar_select 0, %s18, %s16
  $region1: #{tpu_custom_call.1} parent=0
    #allocation2 [shape = 'u8[8192]{0}', space=vmem, size = 0x2000, scoped, tag = 'output window, operand 0']
    #allocation3 [shape = 's32[2]{0}', space=sflag, size = 0x8, scoped, tag = 'scoped memory for tpu_custom_call.1']
    %20 = vsyncpa [#allocation3], 0
    %s21 = scalar_lea.sflag [#allocation3], 1
    %22 = vsyncpa %s21, 0
    loop: start=0, step=1, limit=4
    $region2: #{tpu_custom_call.1} parent=1 // loop_pre_header
      _
    $region3: #{tpu_custom_call.1} parent=1 // loop_header
      %s24 = sphi 0, %s28
      %p25 = scmp.ge.s32.totalorder %s24, 4
      %s31 = sphi 0, %s43
      %s32 = sphi 0, %s39
      %s33 = sphi 0, %s31
      %s34 = sphi 0, %s32
      %s35 = sphi 0, %s33
      %s36 = sphi 0, %s34
      %s48 = sphi 0, %s50
      %s51 = sphi 0, %s48
      %s52 = sphi 0, %s51
      %s68 = sphi 0, %s52
      %s74 = sphi 0, %s76
      %s77 = sphi 0, %s74
      %s78 = sphi 0, %s77
      %s94 = sphi 0, %s78
      %s98 = sphi 0, %s98
      %s100 = sphi 0, %s98
      %s101 = sphi 0, %s100
      %s115 = sphi 0, %s101
      %s119 = sphi 0, %s119
      %s121 = sphi 0, %s119
      %s122 = sphi 0, %s121
      %s136 = sphi 0, %s122
      %s140 = sphi 0, %s140
      %s142 = sphi 0, %s140
      %s143 = sphi 0, %s142
      %s157 = sphi 0, %s143
      %s161 = sphi 0, %s161
      %s163 = sphi 0, %s161
      %s164 = sphi 0, %s163
      %s178 = sphi 0, %s164
      %s182 = sphi 0, %s182
      %s184 = sphi 0, %s182
      %s185 = sphi 0, %s184
      %s199 = sphi 0, %s185
      %s203 = sphi 0, %s203
      %s205 = sphi 0, %s203
      %s206 = sphi 0, %s205
      %s220 = sphi 0, %s206
      %s224 = sphi 0, %s224
      %s226 = sphi 0, %s224
      %s227 = sphi 0, %s226
      %s241 = sphi 0, %s227
      %s245 = sphi 0, %s245
      %s247 = sphi 0, %s245
      %s248 = sphi 0, %s247
      %s262 = sphi 0, %s248
      %s266 = sphi 0, %s266
      %s268 = sphi 0, %s266
      %s269 = sphi 0, %s268
      %s283 = sphi 0, %s269
      %s287 = sphi 0, %s287
      %s289 = sphi 0, %s287
      %s290 = sphi 0, %s289
      %s304 = sphi 0, %s290
      %s308 = sphi 0, %s308
      %s310 = sphi 0, %s308
      %s311 = sphi 0, %s310
      %s325 = sphi 0, %s311
      %s329 = sphi 0, %s329
      %s331 = sphi 0, %s329
      %s332 = sphi 0, %s331
      %s346 = sphi 0, %s332
      %s350 = sphi 0, %s350
      %s352 = sphi 0, %s350
      %s353 = sphi 0, %s352
      %s367 = sphi 0, %s353
      %s375 = sphi 0, %s377
      %s378 = sphi 0, %s375
      %s379 = sphi 0, %s378
      %s395 = sphi 0, %s379
    $region4: #{tpu_custom_call.1} parent=1 // loop_header_branch
      %27 = sbr.rel (%p25) target = $region8
    $region5: #{tpu_custom_call.1} parent=1 // loop_body
      %s29 = ssub.s32 %s24, 1
      %s30 = ssub.s32 %s24, 2
      %s37 = sadd.s32 1, %s32
      %p38 = scmp.ge.s32.totalorder %s37, 1
      %s39 = scalar_select %p38, 0, %s37
      %s40 = sadd.s32 1, %s31
      %s41 = scalar_select %p38, %s40, %s31
      %p42 = scmp.ge.s32.totalorder %s41, 2
      %s43 = scalar_select %p42, 0, %s41
      %s44 = ssub.s32 %s31, %s43
      %s45 = ssub.s32 %s32, %s39
      %s46 = sor.u32 %s44, %s45
      %p47 = scmp.eq.s32.totalorder %s46, 0
      %s49 = sadd.s32 %s48, 1
      %s50 = scalar_select %p47, %s48, %s49
      %p53 = pneg %p47
      %p54 = scmp.eq.s32.totalorder %s24, 1
      %p55 = por %p53, %p54
      %p56 = scmp.ne.s32.totalorder %s48, %s51
      %p57 = scmp.eq.s32.totalorder %s24, 0
      %p58 = por %p56, %p57
      %p59 = scmp.ne.s32.totalorder %s48, %s51
      %p60 = scmp.eq.s32.totalorder %s29, 1
      %p61 = por %p59, %p60
      %p62 = scmp.ne.s32.totalorder %s51, %s52
      %p63 = scmp.eq.s32.totalorder %s29, 0
      %p64 = por %p62, %p63
      %p65 = scmp.ne.s32.totalorder %s51, %s52
      %p66 = scmp.eq.s32.totalorder %s30, 1
      %p67 = por %p65, %p66
      %p69 = scmp.ne.s32.totalorder %s52, %s68
      %p70 = scmp.eq.s32.totalorder %s30, 0
      %p71 = por %p69, %p70
      %s72 = ssub.s32 %s31, %s43
      %p73 = scmp.eq.s32.totalorder %s72, 0
      %s75 = sadd.s32 %s74, 1
      %s76 = scalar_select %p73, %s74, %s75
      %p79 = pneg %p73
      %p80 = scmp.eq.s32.totalorder %s24, 1
      %p81 = por %p79, %p80
      %p82 = scmp.ne.s32.totalorder %s74, %s77
      %p83 = scmp.eq.s32.totalorder %s24, 0
      %p84 = por %p82, %p83
      %p85 = scmp.ne.s32.totalorder %s74, %s77
      %p86 = scmp.eq.s32.totalorder %s29, 1
      %p87 = por %p85, %p86
      %p88 = scmp.ne.s32.totalorder %s77, %s78
      %p89 = scmp.eq.s32.totalorder %s29, 0
      %p90 = por %p88, %p89
      %p91 = scmp.ne.s32.totalorder %s77, %s78
      %p92 = scmp.eq.s32.totalorder %s30, 1
      %p93 = por %p91, %p92
      %p95 = scmp.ne.s32.totalorder %s78, %s94
      %p96 = scmp.eq.s32.totalorder %s30, 0
      %p97 = por %p95, %p96
      %s99 = sadd.s32 %s98, 1
      %p102 = scmp.eq.s32.totalorder %s24, 1
      %p103 = scmp.ne.s32.totalorder %s98, %s100
      %p104 = scmp.eq.s32.totalorder %s24, 0
      %p105 = por %p103, %p104
      %p106 = scmp.ne.s32.totalorder %s98, %s100
      %p107 = scmp.eq.s32.totalorder %s29, 1
      %p108 = por %p106, %p107
      %p109 = scmp.ne.s32.totalorder %s100, %s101
      %p110 = scmp.eq.s32.totalorder %s29, 0
      %p111 = por %p109, %p110
      %p112 = scmp.ne.s32.totalorder %s100, %s101
      %p113 = scmp.eq.s32.totalorder %s30, 1
      %p114 = por %p112, %p113
      %p116 = scmp.ne.s32.totalorder %s101, %s115
      %p117 = scmp.eq.s32.totalorder %s30, 0
      %p118 = por %p116, %p117
      %s120 = sadd.s32 %s119, 1
      %p123 = scmp.eq.s32.totalorder %s24, 1
      %p124 = scmp.ne.s32.totalorder %s119, %s121
      %p125 = scmp.eq.s32.totalorder %s24, 0
      %p126 = por %p124, %p125
      %p127 = scmp.ne.s32.totalorder %s119, %s121
      %p128 = scmp.eq.s32.totalorder %s29, 1
      %p129 = por %p127, %p128
      %p130 = scmp.ne.s32.totalorder %s121, %s122
      %p131 = scmp.eq.s32.totalorder %s29, 0
      %p132 = por %p130, %p131
      %p133 = scmp.ne.s32.totalorder %s121, %s122
      %p134 = scmp.eq.s32.totalorder %s30, 1
      %p135 = por %p133, %p134
      %p137 = scmp.ne.s32.totalorder %s122, %s136
      %p138 = scmp.eq.s32.totalorder %s30, 0
      %p139 = por %p137, %p138
      %s141 = sadd.s32 %s140, 1
      %p144 = scmp.eq.s32.totalorder %s24, 1
      %p145 = scmp.ne.s32.totalorder %s140, %s142
      %p146 = scmp.eq.s32.totalorder %s24, 0
      %p147 = por %p145, %p146
      %p148 = scmp.ne.s32.totalorder %s140, %s142
      %p149 = scmp.eq.s32.totalorder %s29, 1
      %p150 = por %p148, %p149
      %p151 = scmp.ne.s32.totalorder %s142, %s143
      %p152 = scmp.eq.s32.totalorder %s29, 0
      %p153 = por %p151, %p152
      %p154 = scmp.ne.s32.totalorder %s142, %s143
      %p155 = scmp.eq.s32.totalorder %s30, 1
      %p156 = por %p154, %p155
      %p158 = scmp.ne.s32.totalorder %s143, %s157
      %p159 = scmp.eq.s32.totalorder %s30, 0
      %p160 = por %p158, %p159
      %s162 = sadd.s32 %s161, 1
      %p165 = scmp.eq.s32.totalorder %s24, 1
      %p166 = scmp.ne.s32.totalorder %s161, %s163
      %p167 = scmp.eq.s32.totalorder %s24, 0
      %p168 = por %p166, %p167
      %p169 = scmp.ne.s32.totalorder %s161, %s163
      %p170 = scmp.eq.s32.totalorder %s29, 1
      %p171 = por %p169, %p170
      %p172 = scmp.ne.s32.totalorder %s163, %s164
      %p173 = scmp.eq.s32.totalorder %s29, 0
      %p174 = por %p172, %p173
      %p175 = scmp.ne.s32.totalorder %s163, %s164
      %p176 = scmp.eq.s32.totalorder %s30, 1
      %p177 = por %p175, %p176
      %p179 = scmp.ne.s32.totalorder %s164, %s178
      %p180 = scmp.eq.s32.totalorder %s30, 0
      %p181 = por %p179, %p180
      %s183 = sadd.s32 %s182, 1
      %p186 = scmp.eq.s32.totalorder %s24, 1
      %p187 = scmp.ne.s32.totalorder %s182, %s184
      %p188 = scmp.eq.s32.totalorder %s24, 0
      %p189 = por %p187, %p188
      %p190 = scmp.ne.s32.totalorder %s182, %s184
      %p191 = scmp.eq.s32.totalorder %s29, 1
      %p192 = por %p190, %p191
      %p193 = scmp.ne.s32.totalorder %s184, %s185
      %p194 = scmp.eq.s32.totalorder %s29, 0
      %p195 = por %p193, %p194
      %p196 = scmp.ne.s32.totalorder %s184, %s185
      %p197 = scmp.eq.s32.totalorder %s30, 1
      %p198 = por %p196, %p197
      %p200 = scmp.ne.s32.totalorder %s185, %s199
      %p201 = scmp.eq.s32.totalorder %s30, 0
      %p202 = por %p200, %p201
      %s204 = sadd.s32 %s203, 1
      %p207 = scmp.eq.s32.totalorder %s24, 1
      %p208 = scmp.ne.s32.totalorder %s203, %s205
      %p209 = scmp.eq.s32.totalorder %s24, 0
      %p210 = por %p208, %p209
      %p211 = scmp.ne.s32.totalorder %s203, %s205
      %p212 = scmp.eq.s32.totalorder %s29, 1
      %p213 = por %p211, %p212
      %p214 = scmp.ne.s32.totalorder %s205, %s206
      %p215 = scmp.eq.s32.totalorder %s29, 0
      %p216 = por %p214, %p215
      %p217 = scmp.ne.s32.totalorder %s205, %s206
      %p218 = scmp.eq.s32.totalorder %s30, 1
      %p219 = por %p217, %p218
      %p221 = scmp.ne.s32.totalorder %s206, %s220
      %p222 = scmp.eq.s32.totalorder %s30, 0
      %p223 = por %p221, %p222
      %s225 = sadd.s32 %s224, 1
      %p228 = scmp.eq.s32.totalorder %s24, 1
      %p229 = scmp.ne.s32.totalorder %s224, %s226
      %p230 = scmp.eq.s32.totalorder %s24, 0
      %p231 = por %p229, %p230
      %p232 = scmp.ne.s32.totalorder %s224, %s226
      %p233 = scmp.eq.s32.totalorder %s29, 1
      %p234 = por %p232, %p233
      %p235 = scmp.ne.s32.totalorder %s226, %s227
      %p236 = scmp.eq.s32.totalorder %s29, 0
      %p237 = por %p235, %p236
      %p238 = scmp.ne.s32.totalorder %s226, %s227
      %p239 = scmp.eq.s32.totalorder %s30, 1
      %p240 = por %p238, %p239
      %p242 = scmp.ne.s32.totalorder %s227, %s241
      %p243 = scmp.eq.s32.totalorder %s30, 0
      %p244 = por %p242, %p243
      %s246 = sadd.s32 %s245, 1
      %p249 = scmp.eq.s32.totalorder %s24, 1
      %p250 = scmp.ne.s32.totalorder %s245, %s247
      %p251 = scmp.eq.s32.totalorder %s24, 0
      %p252 = por %p250, %p251
      %p253 = scmp.ne.s32.totalorder %s245, %s247
      %p254 = scmp.eq.s32.totalorder %s29, 1
      %p255 = por %p253, %p254
      %p256 = scmp.ne.s32.totalorder %s247, %s248
      %p257 = scmp.eq.s32.totalorder %s29, 0
      %p258 = por %p256, %p257
      %p259 = scmp.ne.s32.totalorder %s247, %s248
      %p260 = scmp.eq.s32.totalorder %s30, 1
      %p261 = por %p259, %p260
      %p263 = scmp.ne.s32.totalorder %s248, %s262
      %p264 = scmp.eq.s32.totalorder %s30, 0
      %p265 = por %p263, %p264
      %s267 = sadd.s32 %s266, 1
      %p270 = scmp.eq.s32.totalorder %s24, 1
      %p271 = scmp.ne.s32.totalorder %s266, %s268
      %p272 = scmp.eq.s32.totalorder %s24, 0
      %p273 = por %p271, %p272
      %p274 = scmp.ne.s32.totalorder %s266, %s268
      %p275 = scmp.eq.s32.totalorder %s29, 1
      %p276 = por %p274, %p275
      %p277 = scmp.ne.s32.totalorder %s268, %s269
      %p278 = scmp.eq.s32.totalorder %s29, 0
      %p279 = por %p277, %p278
      %p280 = scmp.ne.s32.totalorder %s268, %s269
      %p281 = scmp.eq.s32.totalorder %s30, 1
      %p282 = por %p280, %p281
      %p284 = scmp.ne.s32.totalorder %s269, %s283
      %p285 = scmp.eq.s32.totalorder %s30, 0
      %p286 = por %p284, %p285
      %s288 = sadd.s32 %s287, 1
      %p291 = scmp.eq.s32.totalorder %s24, 1
      %p292 = scmp.ne.s32.totalorder %s287, %s289
      %p293 = scmp.eq.s32.totalorder %s24, 0
      %p294 = por %p292, %p293
      %p295 = scmp.ne.s32.totalorder %s287, %s289
      %p296 = scmp.eq.s32.totalorder %s29, 1
      %p297 = por %p295, %p296
      %p298 = scmp.ne.s32.totalorder %s289, %s290
      %p299 = scmp.eq.s32.totalorder %s29, 0
      %p300 = por %p298, %p299
      %p301 = scmp.ne.s32.totalorder %s289, %s290
      %p302 = scmp.eq.s32.totalorder %s30, 1
      %p303 = por %p301, %p302
      %p305 = scmp.ne.s32.totalorder %s290, %s304
      %p306 = scmp.eq.s32.totalorder %s30, 0
      %p307 = por %p305, %p306
      %s309 = sadd.s32 %s308, 1
      %p312 = scmp.eq.s32.totalorder %s24, 1
      %p313 = scmp.ne.s32.totalorder %s308, %s310
      %p314 = scmp.eq.s32.totalorder %s24, 0
      %p315 = por %p313, %p314
      %p316 = scmp.ne.s32.totalorder %s308, %s310
      %p317 = scmp.eq.s32.totalorder %s29, 1
      %p318 = por %p316, %p317
      %p319 = scmp.ne.s32.totalorder %s310, %s311
      %p320 = scmp.eq.s32.totalorder %s29, 0
      %p321 = por %p319, %p320
      %p322 = scmp.ne.s32.totalorder %s310, %s311
      %p323 = scmp.eq.s32.totalorder %s30, 1
      %p324 = por %p322, %p323
      %p326 = scmp.ne.s32.totalorder %s311, %s325
      %p327 = scmp.eq.s32.totalorder %s30, 0
      %p328 = por %p326, %p327
      %s330 = sadd.s32 %s329, 1
      %p333 = scmp.eq.s32.totalorder %s24, 1
      %p334 = scmp.ne.s32.totalorder %s329, %s331
      %p335 = scmp.eq.s32.totalorder %s24, 0
      %p336 = por %p334, %p335
      %p337 = scmp.ne.s32.totalorder %s329, %s331
      %p338 = scmp.eq.s32.totalorder %s29, 1
      %p339 = por %p337, %p338
      %p340 = scmp.ne.s32.totalorder %s331, %s332
      %p341 = scmp.eq.s32.totalorder %s29, 0
      %p342 = por %p340, %p341
      %p343 = scmp.ne.s32.totalorder %s331, %s332
      %p344 = scmp.eq.s32.totalorder %s30, 1
      %p345 = por %p343, %p344
      %p347 = scmp.ne.s32.totalorder %s332, %s346
      %p348 = scmp.eq.s32.totalorder %s30, 0
      %p349 = por %p347, %p348
      %s351 = sadd.s32 %s350, 1
      %p354 = scmp.eq.s32.totalorder %s24, 1
      %p355 = scmp.ne.s32.totalorder %s350, %s352
      %p356 = scmp.eq.s32.totalorder %s24, 0
      %p357 = por %p355, %p356
      %p358 = scmp.ne.s32.totalorder %s350, %s352
      %p359 = scmp.eq.s32.totalorder %s29, 1
      %p360 = por %p358, %p359
      %p361 = scmp.ne.s32.totalorder %s352, %s353
      %p362 = scmp.eq.s32.totalorder %s29, 0
      %p363 = por %p361, %p362
      %p364 = scmp.ne.s32.totalorder %s352, %s353
      %p365 = scmp.eq.s32.totalorder %s30, 1
      %p366 = por %p364, %p365
      %p368 = scmp.ne.s32.totalorder %s353, %s367
      %p369 = scmp.eq.s32.totalorder %s30, 0
      %p370 = por %p368, %p369
      %s371 = ssub.s32 %s31, %s43
      %s372 = ssub.s32 %s32, %s39
      %s373 = sor.u32 %s371, %s372
      %p374 = scmp.eq.s32.totalorder %s373, 0
      %s376 = sadd.s32 %s375, 1
      %s377 = scalar_select %p374, %s375, %s376
      %p380 = pneg %p374
      %p381 = scmp.eq.s32.totalorder %s24, 1
      %p382 = por %p380, %p381
      %p383 = scmp.ne.s32.totalorder %s375, %s378
      %p384 = scmp.eq.s32.totalorder %s24, 0
      %p385 = por %p383, %p384
      %p386 = scmp.ne.s32.totalorder %s375, %s378
      %p387 = scmp.eq.s32.totalorder %s29, 1
      %p388 = por %p386, %p387
      %p389 = scmp.ne.s32.totalorder %s378, %s379
      %p390 = scmp.eq.s32.totalorder %s29, 0
      %p391 = por %p389, %p390
      %p392 = scmp.ne.s32.totalorder %s378, %s379
      %p393 = scmp.eq.s32.totalorder %s30, 1
      %p394 = por %p392, %p393
      %p396 = scmp.ne.s32.totalorder %s379, %s395
      %p397 = scmp.eq.s32.totalorder %s30, 0
      %p398 = por %p396, %p397
      %p399 = scmp.le.s32.totalorder 1, %s24
      %p400 = scmp.lt.s32.totalorder %s24, 3
      %p401 = pnand %p399, %p400
      %p402 = pneg %p401
      // Predicated region
      $region9: #{tpu_custom_call.1} parent=5 // pred_check
        _
      $region10: #{tpu_custom_call.1} parent=5 // pred_check_branch
        %404 = sbr.rel (%p401) target = $region12
      $region11: #{tpu_custom_call.1} parent=5 // pred_region
        %s405 = ssub.s32 %s24, 1
        // Predicated region
        $region13: #{tpu_custom_call.1} parent=11 // pred_check
          %p406 = pneg %p111
        $region14: #{tpu_custom_call.1} parent=11 // pred_check_branch
          %408 = sbr.rel (%p406) target = $region16
        $region15: #{tpu_custom_call.1} parent=11 // pred_region
          _
        $region16: #{tpu_custom_call.1} parent=11 // pred_fallthru
          _
        // Predicated region
        $region17: #{tpu_custom_call.1} parent=11 // pred_check
          %p409 = pneg %p132
        $region18: #{tpu_custom_call.1} parent=11 // pred_check_branch
          %411 = sbr.rel (%p409) target = $region20
        $region19: #{tpu_custom_call.1} parent=11 // pred_region
          _
        $region20: #{tpu_custom_call.1} parent=11 // pred_fallthru
          _
        // Predicated region
        $region21: #{tpu_custom_call.1} parent=11 // pred_check
          %p412 = pneg %p153
        $region22: #{tpu_custom_call.1} parent=11 // pred_check_branch
          %414 = sbr.rel (%p412) target = $region24
        $region23: #{tpu_custom_call.1} parent=11 // pred_region
          _
        $region24: #{tpu_custom_call.1} parent=11 // pred_fallthru
          _
        // Predicated region
        $region25: #{tpu_custom_call.1} parent=11 // pred_check
          %p415 = pneg %p174
        $region26: #{tpu_custom_call.1} parent=11 // pred_check_branch
          %417 = sbr.rel (%p415) target = $region28
        $region27: #{tpu_custom_call.1} parent=11 // pred_region
          _
        $region28: #{tpu_custom_call.1} parent=11 // pred_fallthru
          _
        // Predicated region
        $region29: #{tpu_custom_call.1} parent=11 // pred_check
          %p418 = pneg %p195
        $region30: #{tpu_custom_call.1} parent=11 // pred_check_branch
          %420 = sbr.rel (%p418) target = $region32
        $region31: #{tpu_custom_call.1} parent=11 // pred_region
          _
        $region32: #{tpu_custom_call.1} parent=11 // pred_fallthru
          _
        // Predicated region
        $region33: #{tpu_custom_call.1} parent=11 // pred_check
          %p421 = pneg %p216
        $region34: #{tpu_custom_call.1} parent=11 // pred_check_branch
          %423 = sbr.rel (%p421) target = $region36
        $region35: #{tpu_custom_call.1} parent=11 // pred_region
          _
        $region36: #{tpu_custom_call.1} parent=11 // pred_fallthru
          _
        // Predicated region
        $region37: #{tpu_custom_call.1} parent=11 // pred_check
          %p424 = pneg %p237
        $region38: #{tpu_custom_call.1} parent=11 // pred_check_branch
          %426 = sbr.rel (%p424) target = $region40
        $region39: #{tpu_custom_call.1} parent=11 // pred_region
          _
        $region40: #{tpu_custom_call.1} parent=11 // pred_fallthru
          _
        // Predicated region
        $region41: #{tpu_custom_call.1} parent=11 // pred_check
          %p427 = pneg %p258
        $region42: #{tpu_custom_call.1} parent=11 // pred_check_branch
          %429 = sbr.rel (%p427) target = $region44
        $region43: #{tpu_custom_call.1} parent=11 // pred_region
          _
        $region44: #{tpu_custom_call.1} parent=11 // pred_fallthru
          _
        // Predicated region
        $region45: #{tpu_custom_call.1} parent=11 // pred_check
          %p430 = pneg %p279
        $region46: #{tpu_custom_call.1} parent=11 // pred_check_branch
          %432 = sbr.rel (%p430) target = $region48
        $region47: #{tpu_custom_call.1} parent=11 // pred_region
          _
        $region48: #{tpu_custom_call.1} parent=11 // pred_fallthru
          _
        // Predicated region
        $region49: #{tpu_custom_call.1} parent=11 // pred_check
          %p433 = pneg %p300
        $region50: #{tpu_custom_call.1} parent=11 // pred_check_branch
          %435 = sbr.rel (%p433) target = $region52
        $region51: #{tpu_custom_call.1} parent=11 // pred_region
          _
        $region52: #{tpu_custom_call.1} parent=11 // pred_fallthru
          _
        // Predicated region
        $region53: #{tpu_custom_call.1} parent=11 // pred_check
          %p436 = pneg %p321
        $region54: #{tpu_custom_call.1} parent=11 // pred_check_branch
          %438 = sbr.rel (%p436) target = $region56
        $region55: #{tpu_custom_call.1} parent=11 // pred_region
          _
        $region56: #{tpu_custom_call.1} parent=11 // pred_fallthru
          _
        // Predicated region
        $region57: #{tpu_custom_call.1} parent=11 // pred_check
          %p439 = pneg %p342
        $region58: #{tpu_custom_call.1} parent=11 // pred_check_branch
          %441 = sbr.rel (%p439) target = $region60
        $region59: #{tpu_custom_call.1} parent=11 // pred_region
          _
        $region60: #{tpu_custom_call.1} parent=11 // pred_fallthru
          _
        // Predicated region
        $region61: #{tpu_custom_call.1} parent=11 // pred_check
          %p442 = pneg %p363
        $region62: #{tpu_custom_call.1} parent=11 // pred_check_branch
          %444 = sbr.rel (%p442) target = $region64
        $region63: #{tpu_custom_call.1} parent=11 // pred_region
          _
        $region64: #{tpu_custom_call.1} parent=11 // pred_fallthru
          _
      $region12: #{tpu_custom_call.1} parent=5 // pred_fallthru
        _
      %p445 = scmp.lt.s32.totalorder %s24, 2
      // Predicated region
      $region65: #{tpu_custom_call.1} parent=5 // pred_check
        %p446 = pneg %p445
      $region66: #{tpu_custom_call.1} parent=5 // pred_check_branch
        %448 = sbr.rel (%p446) target = $region68
      $region67: #{tpu_custom_call.1} parent=5 // pred_region
        // Predicated region
        $region69: #{tpu_custom_call.1} parent=67 // pred_check
          %p449 = pneg %p58
        $region70: #{tpu_custom_call.1} parent=67 // pred_check_branch
          %451 = sbr.rel (%p449) target = $region72
        $region71: #{tpu_custom_call.1} parent=67 // pred_region
          %p452 = scmp.lt.s32.totalorder %s31, 1
          %s453 = scalar_select %p452, %s31, 1
          %p454 = scmp.lt.s32.totalorder %s32, 0
          %s455 = scalar_select %p454, %s32, 0
          %s456 = sadd.s32 %s455, %s453
          %s457 = smul.addr %s456, 8
          %s458 = scalar_lea.vmem %s0, %s457
        $region72: #{tpu_custom_call.1} parent=67 // pred_fallthru
          _
        // Predicated region
        $region73: #{tpu_custom_call.1} parent=67 // pred_check
          %p459 = pneg %p84
        $region74: #{tpu_custom_call.1} parent=67 // pred_check_branch
          %461 = sbr.rel (%p459) target = $region76
        $region75: #{tpu_custom_call.1} parent=67 // pred_region
          %p462 = scmp.lt.s32.totalorder %s31, 1
          %s463 = scalar_select %p462, %s31, 1
          %s464 = smul.addr %s463, 8
          %s465 = scalar_lea.vmem %s1, %s464
        $region76: #{tpu_custom_call.1} parent=67 // pred_fallthru
          _
      $region68: #{tpu_custom_call.1} parent=5 // pred_fallthru
        _
      %p466 = scmp.le.s32.totalorder 1, %s24
      %p467 = scmp.lt.s32.totalorder %s24, 3
      %p468 = pnand %p466, %p467
      %p469 = pneg %p468
      // Predicated region
      $region77: #{tpu_custom_call.1} parent=5 // pred_check
        _
      $region78: #{tpu_custom_call.1} parent=5 // pred_check_branch
        %471 = sbr.rel (%p468) target = $region80
      $region79: #{tpu_custom_call.1} parent=5 // pred_region
        %s472 = ssub.s32 %s24, 1
        %p473 = scmp.lt.s32.totalorder %s33, 1
        %s474 = scalar_select %p473, %s33, 1
        %p475 = scmp.lt.s32.totalorder %s34, 0
        %s476 = scalar_select %p475, %s34, 0
        %s477 = sadd.s32 %s476, %s474
        %s478 = smul.addr %s477, 8
        %s479 = scalar_lea.vmem %s0, %s478
        %p480 = pneg %p64
        %p481 = pneg %p61
        %p482 = scmp.lt.s32.totalorder %s33, 1
        %s483 = scalar_select %p482, %s33, 1
        %s484 = smul.addr %s483, 8
        %s485 = scalar_lea.vmem %s1, %s484
        %p486 = pneg %p90
        %p487 = pneg %p87
        %p488 = pneg %p111
        %p489 = pneg %p108
        %p490 = pneg %p132
        %p491 = pneg %p129
        %p492 = pneg %p153
        %p493 = pneg %p150
        %p494 = pneg %p174
        %p495 = pneg %p171
        %p496 = pneg %p195
        %p497 = pneg %p192
        %p498 = pneg %p216
        %p499 = pneg %p213
        %p500 = pneg %p237
        %p501 = pneg %p234
        %p502 = pneg %p258
        %p503 = pneg %p255
        %p504 = pneg %p279
        %p505 = pneg %p276
        %p506 = pneg %p300
        %p507 = pneg %p297
        %p508 = pneg %p321
        %p509 = pneg %p318
        %p510 = pneg %p342
        %p511 = pneg %p339
        %p512 = pneg %p363
        %p513 = pneg %p360
        %p514 = pneg %p391
        %p515 = pneg %p388
        %s516 = sand.u32 %s378, 1
        %s517 = scalar_lea.sflag [#allocation3], %s516
        %s518 = sand.u32 %s378, 1
        %s519 = smul.addr %s518, 8
        %s520 = scalar_lea.vmem [#allocation2], %s519
        %p521 = scmp.lt.s32.totalorder %s33, 1
        %s522 = scalar_select %p521, %s33, 1
        %p523 = scmp.lt.s32.totalorder %s34, 0
        %s524 = scalar_select %p523, %s34, 0
        %s525 = sadd.s32 %s524, %s522
        %s526 = smul.addr %s525, 8
        %s527 = scalar_lea.vmem %s0, %s526
        %p528 = scmp.lt.s32.totalorder %s33, 1
        %s529 = scalar_select %p528, %s33, 1
        %s530 = smul.addr %s529, 8
        %s531 = scalar_lea.vmem %s1, %s530
        %v533 = vld [vmem:[%s527] sm:$0xff]
        %v534 = vld [vmem:[%s531] sm:$0xff]
        %v535 = vld [vmem:[%s2] sm:$0x1]
        %v536 = vld [vmem:[%s3] sm:$0x1]
        %vm537 = vcmask 261120
        %v538 = vsel %vm537, %v533, 0.0
        %539 = vadd.xlane.f32.xlu0 %v538
        %v540 = vpop.xlane.xlu0 %539
        %v541 = vrcp.pop 32.0
        %v542 = vmul.f32 %v540, %v541
        %v543 = vsub.f32 %v533, %v542
        %v544 = vmul.f32 %v543, %v543
        %v545 = vsel %vm537, %v544, 0.0
        %546 = vadd.xlane.f32.xlu0 %v545
        %v547 = vpop.xlane.xlu0 %546
        %v548 = vmul.f32 %v547, %v541
        %v549 = vadd.f32 %v548, 1e-05
        %v550 = vrsqrt.pop %v549
        %v551 = vmul.f32 %v543, %v550
        %v553 = vlaneseq
        %v554 = vshrl.u32 %v553, 7
        %v555 = vsub.s32 0, %v554
        %v556 = vrot.slane %v535, %v555
        %v558 = vmul.f32 %v556, %v551
        %v560 = vlaneseq
        %v561 = vshrl.u32 %v560, 7
        %v562 = vsub.s32 0, %v561
        %v563 = vrot.slane %v536, %v562
        %v565 = vadd.f32 %v558, %v563
        %v566 = vpack.c.bf16 %v565, %v565
        %v567 = vsel %vm537, %v534, 0.0
        %568 = vadd.xlane.f32.xlu0 %v567
        %v569 = vpop.xlane.xlu0 %568
        %v570 = vmul.f32 %v569, %v541
        %v571 = vsub.f32 %v534, %v570
        %v572 = vmul.f32 %v571, %v571
        %v573 = vsel %vm537, %v572, 0.0
        %574 = vadd.xlane.f32.xlu0 %v573
        %v575 = vpop.xlane.xlu0 %574
        %v576 = vmul.f32 %v575, %v541
        %v577 = vadd.f32 %v576, 1e-05
        %v578 = vrsqrt.pop %v577
        %v579 = vmul.f32 %v571, %v578
        %v580 = vmul.f32 %v556, %v579
        %v581 = vadd.f32 %v580, %v563
        %v582 = vpack.c.bf16 %v581, %v581
        %v583 = vld [vmem:[%s4] sm:$0xf]
        %v584 = vld [vmem:[%s4 + $0x4] sm:$0xf]
        %v585 = vld [vmem:[%s4 + $0x8] sm:$0xf]
        %v586 = vld [vmem:[%s4 + $0xc] sm:$0xf]
        %v587 = vld [vmem:[%s4 + $0x10] sm:$0xf]
        %v588 = vld [vmem:[%s4 + $0x14] sm:$0xf]
        %v589 = vld [vmem:[%s4 + $0x18] sm:$0xf]
        %v590 = vld [vmem:[%s4 + $0x1c] sm:$0xf]
        %v591 = vld [vmem:[%s4 + $0x20] sm:$0xf]
        %v592 = vld [vmem:[%s4 + $0x24] sm:$0xf]
        %v593 = vld [vmem:[%s4 + $0x28] sm:$0xf]
        %v594 = vld [vmem:[%s4 + $0x2c] sm:$0xf]
        %v595 = vld [vmem:[%s4 + $0x30] sm:$0xf]
        %v596 = vld [vmem:[%s4 + $0x34] sm:$0xf]
        %v597 = vld [vmem:[%s4 + $0x38] sm:$0xf]
        %v598 = vld [vmem:[%s4 + $0x3c] sm:$0xf]
        %v603 = vunpack.c.l.b16 %v583
        %v604 = vunpack.c.l.b16 %v584
        %v605 = vunpack.c.l.b16 %v585
        %v606 = vunpack.c.l.b16 %v586
        %v607 = vpack.c.b16 %v604, %v603
        %v608 = vpack.c.b16 %v606, %v605
        %v612 = vsel %vm537, %v566, 0
        %614 = vmatprep.subr.bf16.mxu0 0
        %615 = vmatpush1.bf16.msra.mxu0 %v607
        %616 = vmatprep.subr.bf16.mxu0 0
        %617 = vmatpush1.bf16.msra.mxu0 %v608
        %618 = vmatprep.subr.bf16.mxu0 0
        %619 = vmatpush1.bf16.msra.mxu0 0
        %620 = vmatprep.subr.bf16.mxu0 0
        %621 = vmatpush1.bf16.msra.mxu0 0
        %622 = vmatprep.subr.bf16.mxu0 0
        %623 = vmatpush1.bf16.msra.mxu0 0
        %624 = vmatprep.subr.bf16.mxu0 0
        %625 = vmatpush1.bf16.msra.mxu0 0
        %626 = vmatprep.subr.bf16.mxu0 0
        %627 = vmatpush1.bf16.msra.mxu0 0
        %628 = vmatprep.subr.bf16.mxu0 0
        %629 = vmatpush1.bf16.msra.mxu0 0
        %630 = vmatprep.subr.bf16.mxu0 0
        %631 = vmatpush1.bf16.msra.mxu0 0
        %632 = vmatprep.subr.bf16.mxu0 0
        %633 = vmatpush1.bf16.msra.mxu0 0
        %634 = vmatprep.subr.bf16.mxu0 0
        %635 = vmatpush1.bf16.msra.mxu0 0
        %636 = vmatprep.subr.bf16.mxu0 0
        %637 = vmatpush1.bf16.msra.mxu0 0
        %638 = vmatprep.subr.bf16.mxu0 0
        %639 = vmatpush1.bf16.msra.mxu0 0
        %640 = vmatprep.subr.bf16.mxu0 0
        %641 = vmatpush1.bf16.msra.mxu0 0
        %642 = vmatprep.subr.bf16.mxu0 0
        %643 = vmatpush1.bf16.msra.mxu0 0
        %644 = vmatprep.subr.bf16.mxu0 0
        %645 = vmatpush1.bf16.msra.mxu0 0
        %646 = vmatprep.mubr.bf16.mxu0 0
        %647 = vmatmul.mubr.bf16.gmra.mrb[0].mxu0 %v612
        %v648 = vpop.f32.mrb[0].mxu0
        %v649 = vadd.f32 0.0, %v648
        %v650 = vpop.f32.mrb[0].mxu0
        %v651 = vpop.f32.mrb[0].mxu0
        %v652 = vpop.f32.mrb[0].mxu0
        %653 = vdwg.mxu0
        %v658 = vunpack.c.l.b16 %v587
        %v659 = vunpack.c.l.b16 %v588
        %v660 = vunpack.c.l.b16 %v589
        %v661 = vunpack.c.l.b16 %v590
        %v662 = vpack.c.b16 %v659, %v658
        %v663 = vpack.c.b16 %v661, %v660
        %666 = vmatprep.subr.bf16.mxu0 0
        %667 = vmatpush1.bf16.msra.mxu0 %v662
        %668 = vmatprep.subr.bf16.mxu0 0
        %669 = vmatpush1.bf16.msra.mxu0 %v663
        %670 = vmatprep.subr.bf16.mxu0 0
        %671 = vmatpush1.bf16.msra.mxu0 0
        %672 = vmatprep.subr.bf16.mxu0 0
        %673 = vmatpush1.bf16.msra.mxu0 0
        %674 = vmatprep.subr.bf16.mxu0 0
        %675 = vmatpush1.bf16.msra.mxu0 0
        %676 = vmatprep.subr.bf16.mxu0 0
        %677 = vmatpush1.bf16.msra.mxu0 0
        %678 = vmatprep.subr.bf16.mxu0 0
        %679 = vmatpush1.bf16.msra.mxu0 0
        %680 = vmatprep.subr.bf16.mxu0 0
        %681 = vmatpush1.bf16.msra.mxu0 0
        %682 = vmatprep.subr.bf16.mxu0 0
        %683 = vmatpush1.bf16.msra.mxu0 0
        %684 = vmatprep.subr.bf16.mxu0 0
        %685 = vmatpush1.bf16.msra.mxu0 0
        %686 = vmatprep.subr.bf16.mxu0 0
        %687 = vmatpush1.bf16.msra.mxu0 0
        %688 = vmatprep.subr.bf16.mxu0 0
        %689 = vmatpush1.bf16.msra.mxu0 0
        %690 = vmatprep.subr.bf16.mxu0 0
        %691 = vmatpush1.bf16.msra.mxu0 0
        %692 = vmatprep.subr.bf16.mxu0 0
        %693 = vmatpush1.bf16.msra.mxu0 0
        %694 = vmatprep.subr.bf16.mxu0 0
        %695 = vmatpush1.bf16.msra.mxu0 0
        %696 = vmatprep.subr.bf16.mxu0 0
        %697 = vmatpush1.bf16.msra.mxu0 0
        %698 = vmatprep.mubr.bf16.mxu0 0
        %699 = vmatmul.mubr.bf16.gmra.mrb[0].mxu0 %v612
        %v700 = vpop.f32.mrb[0].mxu0
        %v701 = vadd.f32 0.0, %v700
        %v702 = vpop.f32.mrb[0].mxu0
        %v703 = vpop.f32.mrb[0].mxu0
        %v704 = vpop.f32.mrb[0].mxu0
        %705 = vdwg.mxu0
        %v710 = vunpack.c.l.b16 %v591
        %v711 = vunpack.c.l.b16 %v592
        %v712 = vunpack.c.l.b16 %v593
        %v713 = vunpack.c.l.b16 %v594
        %v714 = vpack.c.b16 %v711, %v710
        %v715 = vpack.c.b16 %v713, %v712
        %718 = vmatprep.subr.bf16.mxu0 0
        %719 = vmatpush1.bf16.msra.mxu0 %v714
        %720 = vmatprep.subr.bf16.mxu0 0
        %721 = vmatpush1.bf16.msra.mxu0 %v715
        %722 = vmatprep.subr.bf16.mxu0 0
        %723 = vmatpush1.bf16.msra.mxu0 0
        %724 = vmatprep.subr.bf16.mxu0 0
        %725 = vmatpush1.bf16.msra.mxu0 0
        %726 = vmatprep.subr.bf16.mxu0 0
        %727 = vmatpush1.bf16.msra.mxu0 0
        %728 = vmatprep.subr.bf16.mxu0 0
        %729 = vmatpush1.bf16.msra.mxu0 0
        %730 = vmatprep.subr.bf16.mxu0 0
        %731 = vmatpush1.bf16.msra.mxu0 0
        %732 = vmatprep.subr.bf16.mxu0 0
        %733 = vmatpush1.bf16.msra.mxu0 0
        %734 = vmatprep.subr.bf16.mxu0 0
        %735 = vmatpush1.bf16.msra.mxu0 0
        %736 = vmatprep.subr.bf16.mxu0 0
        %737 = vmatpush1.bf16.msra.mxu0 0
        %738 = vmatprep.subr.bf16.mxu0 0
        %739 = vmatpush1.bf16.msra.mxu0 0
        %740 = vmatprep.subr.bf16.mxu0 0
        %741 = vmatpush1.bf16.msra.mxu0 0
        %742 = vmatprep.subr.bf16.mxu0 0
        %743 = vmatpush1.bf16.msra.mxu0 0
        %744 = vmatprep.subr.bf16.mxu0 0
        %745 = vmatpush1.bf16.msra.mxu0 0
        %746 = vmatprep.subr.bf16.mxu0 0
        %747 = vmatpush1.bf16.msra.mxu0 0
        %748 = vmatprep.subr.bf16.mxu0 0
        %749 = vmatpush1.bf16.msra.mxu0 0
        %750 = vmatprep.mubr.bf16.mxu0 0
        %751 = vmatmul.mubr.bf16.gmra.mrb[0].mxu0 %v612
        %v752 = vpop.f32.mrb[0].mxu0
        %v753 = vadd.f32 0.0, %v752
        %v754 = vpop.f32.mrb[0].mxu0
        %v755 = vpop.f32.mrb[0].mxu0
        %v756 = vpop.f32.mrb[0].mxu0
        %757 = vdwg.mxu0
        %v762 = vunpack.c.l.b16 %v595
        %v763 = vunpack.c.l.b16 %v596
        %v764 = vunpack.c.l.b16 %v597
        %v765 = vunpack.c.l.b16 %v598
        %v766 = vpack.c.b16 %v763, %v762
        %v767 = vpack.c.b16 %v765, %v764
        %770 = vmatprep.subr.bf16.mxu0 0
        %771 = vmatpush1.bf16.msra.mxu0 %v766
        %772 = vmatprep.subr.bf16.mxu0 0
        %773 = vmatpush1.bf16.msra.mxu0 %v767
        %774 = vmatprep.subr.bf16.mxu0 0
        %775 = vmatpush1.bf16.msra.mxu0 0
        %776 = vmatprep.subr.bf16.mxu0 0
        %777 = vmatpush1.bf16.msra.mxu0 0
        %778 = vmatprep.subr.bf16.mxu0 0
        %779 = vmatpush1.bf16.msra.mxu0 0
        %780 = vmatprep.subr.bf16.mxu0 0
        %781 = vmatpush1.bf16.msra.mxu0 0
        %782 = vmatprep.subr.bf16.mxu0 0
        %783 = vmatpush1.bf16.msra.mxu0 0
        %784 = vmatprep.subr.bf16.mxu0 0
        %785 = vmatpush1.bf16.msra.mxu0 0
        %786 = vmatprep.subr.bf16.mxu0 0
        %787 = vmatpush1.bf16.msra.mxu0 0
        %788 = vmatprep.subr.bf16.mxu0 0
        %789 = vmatpush1.bf16.msra.mxu0 0
        %790 = vmatprep.subr.bf16.mxu0 0
        %791 = vmatpush1.bf16.msra.mxu0 0
        %792 = vmatprep.subr.bf16.mxu0 0
        %793 = vmatpush1.bf16.msra.mxu0 0
        %794 = vmatprep.subr.bf16.mxu0 0
        %795 = vmatpush1.bf16.msra.mxu0 0
        %796 = vmatprep.subr.bf16.mxu0 0
        %797 = vmatpush1.bf16.msra.mxu0 0
        %798 = vmatprep.subr.bf16.mxu0 0
        %799 = vmatpush1.bf16.msra.mxu0 0
        %800 = vmatprep.subr.bf16.mxu0 0
        %801 = vmatpush1.bf16.msra.mxu0 0
        %802 = vmatprep.mubr.bf16.mxu0 0
        %803 = vmatmul.mubr.bf16.gmra.mrb[0].mxu0 %v612
        %v804 = vpop.f32.mrb[0].mxu0
        %v805 = vadd.f32 0.0, %v804
        %v806 = vpop.f32.mrb[0].mxu0
        %v807 = vpop.f32.mrb[0].mxu0
        %v808 = vpop.f32.mrb[0].mxu0
        %809 = vdwg.mxu0
        %v810 = vld [vmem:[%s5] sm:$0xf]
        %v811 = vld [vmem:[%s5 + $0x4] sm:$0xf]
        %v812 = vld [vmem:[%s5 + $0x8] sm:$0xf]
        %v813 = vld [vmem:[%s5 + $0xc] sm:$0xf]
        %v814 = vld [vmem:[%s5 + $0x10] sm:$0xf]
        %v815 = vld [vmem:[%s5 + $0x14] sm:$0xf]
        %v816 = vld [vmem:[%s5 + $0x18] sm:$0xf]
        %v817 = vld [vmem:[%s5 + $0x1c] sm:$0xf]
        %v818 = vld [vmem:[%s5 + $0x20] sm:$0xf]
        %v819 = vld [vmem:[%s5 + $0x24] sm:$0xf]
        %v820 = vld [vmem:[%s5 + $0x28] sm:$0xf]
        %v821 = vld [vmem:[%s5 + $0x2c] sm:$0xf]
        %v822 = vld [vmem:[%s5 + $0x30] sm:$0xf]
        %v823 = vld [vmem:[%s5 + $0x34] sm:$0xf]
        %v824 = vld [vmem:[%s5 + $0x38] sm:$0xf]
        %v825 = vld [vmem:[%s5 + $0x3c] sm:$0xf]
        %v830 = vunpack.c.l.b16 %v810
        %v831 = vunpack.c.l.b16 %v811
        %v832 = vunpack.c.l.b16 %v812
        %v833 = vunpack.c.l.b16 %v813
        %v834 = vpack.c.b16 %v831, %v830
        %v835 = vpack.c.b16 %v833, %v832
        %v839 = vsel %vm537, %v582, 0
        %841 = vmatprep.subr.bf16.mxu0 0
        %842 = vmatpush1.bf16.msra.mxu0 %v834
        %843 = vmatprep.subr.bf16.mxu0 0
        %844 = vmatpush1.bf16.msra.mxu0 %v835
        %845 = vmatprep.subr.bf16.mxu0 0
        %846 = vmatpush1.bf16.msra.mxu0 0
        %847 = vmatprep.subr.bf16.mxu0 0
        %848 = vmatpush1.bf16.msra.mxu0 0
        %849 = vmatprep.subr.bf16.mxu0 0
        %850 = vmatpush1.bf16.msra.mxu0 0
        %851 = vmatprep.subr.bf16.mxu0 0
        %852 = vmatpush1.bf16.msra.mxu0 0
        %853 = vmatprep.subr.bf16.mxu0 0
        %854 = vmatpush1.bf16.msra.mxu0 0
        %855 = vmatprep.subr.bf16.mxu0 0
        %856 = vmatpush1.bf16.msra.mxu0 0
        %857 = vmatprep.subr.bf16.mxu0 0
        %858 = vmatpush1.bf16.msra.mxu0 0
        %859 = vmatprep.subr.bf16.mxu0 0
        %860 = vmatpush1.bf16.msra.mxu0 0
        %861 = vmatprep.subr.bf16.mxu0 0
        %862 = vmatpush1.bf16.msra.mxu0 0
        %863 = vmatprep.subr.bf16.mxu0 0
        %864 = vmatpush1.bf16.msra.mxu0 0
        %865 = vmatprep.subr.bf16.mxu0 0
        %866 = vmatpush1.bf16.msra.mxu0 0
        %867 = vmatprep.subr.bf16.mxu0 0
        %868 = vmatpush1.bf16.msra.mxu0 0
        %869 = vmatprep.subr.bf16.mxu0 0
        %870 = vmatpush1.bf16.msra.mxu0 0
        %871 = vmatprep.subr.bf16.mxu0 0
        %872 = vmatpush1.bf16.msra.mxu0 0
        %873 = vmatprep.mubr.bf16.mxu0 0
        %874 = vmatmul.mubr.bf16.gmra.mrb[0].mxu0 %v839
        %v875 = vpop.f32.mrb[0].mxu0
        %v876 = vadd.f32 0.0, %v875
        %v877 = vpop.f32.mrb[0].mxu0
        %v878 = vpop.f32.mrb[0].mxu0
        %v879 = vpop.f32.mrb[0].mxu0
        %880 = vdwg.mxu0
        %v885 = vunpack.c.l.b16 %v814
        %v886 = vunpack.c.l.b16 %v815
        %v887 = vunpack.c.l.b16 %v816
        %v888 = vunpack.c.l.b16 %v817
        %v889 = vpack.c.b16 %v886, %v885
        %v890 = vpack.c.b16 %v888, %v887
        %893 = vmatprep.subr.bf16.mxu0 0
        %894 = vmatpush1.bf16.msra.mxu0 %v889
        %895 = vmatprep.subr.bf16.mxu0 0
        %896 = vmatpush1.bf16.msra.mxu0 %v890
        %897 = vmatprep.subr.bf16.mxu0 0
        %898 = vmatpush1.bf16.msra.mxu0 0
        %899 = vmatprep.subr.bf16.mxu0 0
        %900 = vmatpush1.bf16.msra.mxu0 0
        %901 = vmatprep.subr.bf16.mxu0 0
        %902 = vmatpush1.bf16.msra.mxu0 0
        %903 = vmatprep.subr.bf16.mxu0 0
        %904 = vmatpush1.bf16.msra.mxu0 0
        %905 = vmatprep.subr.bf16.mxu0 0
        %906 = vmatpush1.bf16.msra.mxu0 0
        %907 = vmatprep.subr.bf16.mxu0 0
        %908 = vmatpush1.bf16.msra.mxu0 0
        %909 = vmatprep.subr.bf16.mxu0 0
        %910 = vmatpush1.bf16.msra.mxu0 0
        %911 = vmatprep.subr.bf16.mxu0 0
        %912 = vmatpush1.bf16.msra.mxu0 0
        %913 = vmatprep.subr.bf16.mxu0 0
        %914 = vmatpush1.bf16.msra.mxu0 0
        %915 = vmatprep.subr.bf16.mxu0 0
        %916 = vmatpush1.bf16.msra.mxu0 0
        %917 = vmatprep.subr.bf16.mxu0 0
        %918 = vmatpush1.bf16.msra.mxu0 0
        %919 = vmatprep.subr.bf16.mxu0 0
        %920 = vmatpush1.bf16.msra.mxu0 0
        %921 = vmatprep.subr.bf16.mxu0 0
        %922 = vmatpush1.bf16.msra.mxu0 0
        %923 = vmatprep.subr.bf16.mxu0 0
        %924 = vmatpush1.bf16.msra.mxu0 0
        %925 = vmatprep.mubr.bf16.mxu0 0
        %926 = vmatmul.mubr.bf16.gmra.mrb[0].mxu0 %v839
        %v927 = vpop.f32.mrb[0].mxu0
        %v928 = vadd.f32 0.0, %v927
        %v929 = vpop.f32.mrb[0].mxu0
        %v930 = vpop.f32.mrb[0].mxu0
        %v931 = vpop.f32.mrb[0].mxu0
        %932 = vdwg.mxu0
        %v937 = vunpack.c.l.b16 %v818
        %v938 = vunpack.c.l.b16 %v819
        %v939 = vunpack.c.l.b16 %v820
        %v940 = vunpack.c.l.b16 %v821
        %v941 = vpack.c.b16 %v938, %v937
        %v942 = vpack.c.b16 %v940, %v939
        %945 = vmatprep.subr.bf16.mxu0 0
        %946 = vmatpush1.bf16.msra.mxu0 %v941
        %947 = vmatprep.subr.bf16.mxu0 0
        %948 = vmatpush1.bf16.msra.mxu0 %v942
        %949 = vmatprep.subr.bf16.mxu0 0
        %950 = vmatpush1.bf16.msra.mxu0 0
        %951 = vmatprep.subr.bf16.mxu0 0
        %952 = vmatpush1.bf16.msra.mxu0 0
        %953 = vmatprep.subr.bf16.mxu0 0
        %954 = vmatpush1.bf16.msra.mxu0 0
        %955 = vmatprep.subr.bf16.mxu0 0
        %956 = vmatpush1.bf16.msra.mxu0 0
        %957 = vmatprep.subr.bf16.mxu0 0
        %958 = vmatpush1.bf16.msra.mxu0 0
        %959 = vmatprep.subr.bf16.mxu0 0
        %960 = vmatpush1.bf16.msra.mxu0 0
        %961 = vmatprep.subr.bf16.mxu0 0
        %962 = vmatpush1.bf16.msra.mxu0 0
        %963 = vmatprep.subr.bf16.mxu0 0
        %964 = vmatpush1.bf16.msra.mxu0 0
        %965 = vmatprep.subr.bf16.mxu0 0
        %966 = vmatpush1.bf16.msra.mxu0 0
        %967 = vmatprep.subr.bf16.mxu0 0
        %968 = vmatpush1.bf16.msra.mxu0 0
        %969 = vmatprep.subr.bf16.mxu0 0
        %970 = vmatpush1.bf16.msra.mxu0 0
        %971 = vmatprep.subr.bf16.mxu0 0
        %972 = vmatpush1.bf16.msra.mxu0 0
        %973 = vmatprep.subr.bf16.mxu0 0
        %974 = vmatpush1.bf16.msra.mxu0 0
        %975 = vmatprep.subr.bf16.mxu0 0
        %976 = vmatpush1.bf16.msra.mxu0 0
        %977 = vmatprep.mubr.bf16.mxu0 0
        %978 = vmatmul.mubr.bf16.gmra.mrb[0].mxu0 %v839
        %v979 = vpop.f32.mrb[0].mxu0
        %v980 = vadd.f32 0.0, %v979
        %v981 = vpop.f32.mrb[0].mxu0
        %v982 = vpop.f32.mrb[0].mxu0
        %v983 = vpop.f32.mrb[0].mxu0
        %984 = vdwg.mxu0
        %v989 = vunpack.c.l.b16 %v822
        %v990 = vunpack.c.l.b16 %v823
        %v991 = vunpack.c.l.b16 %v824
        %v992 = vunpack.c.l.b16 %v825
        %v993 = vpack.c.b16 %v990, %v989
        %v994 = vpack.c.b16 %v992, %v991
        %997 = vmatprep.subr.bf16.mxu0 0
        %998 = vmatpush1.bf16.msra.mxu0 %v993
        %999 = vmatprep.subr.bf16.mxu0 0
        %1000 = vmatpush1.bf16.msra.mxu0 %v994
        %1001 = vmatprep.subr.bf16.mxu0 0
        %1002 = vmatpush1.bf16.msra.mxu0 0
        %1003 = vmatprep.subr.bf16.mxu0 0
        %1004 = vmatpush1.bf16.msra.mxu0 0
        %1005 = vmatprep.subr.bf16.mxu0 0
        %1006 = vmatpush1.bf16.msra.mxu0 0
        %1007 = vmatprep.subr.bf16.mxu0 0
        %1008 = vmatpush1.bf16.msra.mxu0 0
        %1009 = vmatprep.subr.bf16.mxu0 0
        %1010 = vmatpush1.bf16.msra.mxu0 0
        %1011 = vmatprep.subr.bf16.mxu0 0
        %1012 = vmatpush1.bf16.msra.mxu0 0
        %1013 = vmatprep.subr.bf16.mxu0 0
        %1014 = vmatpush1.bf16.msra.mxu0 0
        %1015 = vmatprep.subr.bf16.mxu0 0
        %1016 = vmatpush1.bf16.msra.mxu0 0
        %1017 = vmatprep.subr.bf16.mxu0 0
        %1018 = vmatpush1.bf16.msra.mxu0 0
        %1019 = vmatprep.subr.bf16.mxu0 0
        %1020 = vmatpush1.bf16.msra.mxu0 0
        %1021 = vmatprep.subr.bf16.mxu0 0
        %1022 = vmatpush1.bf16.msra.mxu0 0
        %1023 = vmatprep.subr.bf16.mxu0 0
        %1024 = vmatpush1.bf16.msra.mxu0 0
        %1025 = vmatprep.subr.bf16.mxu0 0
        %1026 = vmatpush1.bf16.msra.mxu0 0
        %1027 = vmatprep.subr.bf16.mxu0 0
        %1028 = vmatpush1.bf16.msra.mxu0 0
        %1029 = vmatprep.mubr.bf16.mxu0 0
        %1030 = vmatmul.mubr.bf16.gmra.mrb[0].mxu0 %v839
        %v1031 = vpop.f32.mrb[0].mxu0
        %v1032 = vadd.f32 0.0, %v1031
        %v1033 = vpop.f32.mrb[0].mxu0
        %v1034 = vpop.f32.mrb[0].mxu0
        %v1035 = vpop.f32.mrb[0].mxu0
        %1036 = vdwg.mxu0
        %v1037 = vld [vmem:[%s6] sm:$0xf]
        %v1038 = vld [vmem:[%s6 + $0x4] sm:$0xf]
        %v1039 = vld [vmem:[%s6 + $0x8] sm:$0xf]
        %v1040 = vld [vmem:[%s6 + $0xc] sm:$0xf]
        %v1041 = vld [vmem:[%s6 + $0x10] sm:$0xf]
        %v1042 = vld [vmem:[%s6 + $0x14] sm:$0xf]
        %v1043 = vld [vmem:[%s6 + $0x18] sm:$0xf]
        %v1044 = vld [vmem:[%s6 + $0x1c] sm:$0xf]
        %v1045 = vld [vmem:[%s6 + $0x20] sm:$0xf]
        %v1046 = vld [vmem:[%s6 + $0x24] sm:$0xf]
        %v1047 = vld [vmem:[%s6 + $0x28] sm:$0xf]
        %v1048 = vld [vmem:[%s6 + $0x2c] sm:$0xf]
        %v1049 = vld [vmem:[%s6 + $0x30] sm:$0xf]
        %v1050 = vld [vmem:[%s6 + $0x34] sm:$0xf]
        %v1051 = vld [vmem:[%s6 + $0x38] sm:$0xf]
        %v1052 = vld [vmem:[%s6 + $0x3c] sm:$0xf]
        %v1057 = vunpack.c.l.b16 %v1037
        %v1058 = vunpack.c.l.b16 %v1038
        %v1059 = vunpack.c.l.b16 %v1039
        %v1060 = vunpack.c.l.b16 %v1040
        %v1061 = vpack.c.b16 %v1058, %v1057
        %v1062 = vpack.c.b16 %v1060, %v1059
        %1065 = vmatprep.subr.bf16.mxu0 0
        %1066 = vmatpush1.bf16.msra.mxu0 %v1061
        %1067 = vmatprep.subr.bf16.mxu0 0
        %1068 = vmatpush1.bf16.msra.mxu0 %v1062
        %1069 = vmatprep.subr.bf16.mxu0 0
        %1070 = vmatpush1.bf16.msra.mxu0 0
        %1071 = vmatprep.subr.bf16.mxu0 0
        %1072 = vmatpush1.bf16.msra.mxu0 0
        %1073 = vmatprep.subr.bf16.mxu0 0
        %1074 = vmatpush1.bf16.msra.mxu0 0
        %1075 = vmatprep.subr.bf16.mxu0 0
        %1076 = vmatpush1.bf16.msra.mxu0 0
        %1077 = vmatprep.subr.bf16.mxu0 0
        %1078 = vmatpush1.bf16.msra.mxu0 0
        %1079 = vmatprep.subr.bf16.mxu0 0
        %1080 = vmatpush1.bf16.msra.mxu0 0
        %1081 = vmatprep.subr.bf16.mxu0 0
        %1082 = vmatpush1.bf16.msra.mxu0 0
        %1083 = vmatprep.subr.bf16.mxu0 0
        %1084 = vmatpush1.bf16.msra.mxu0 0
        %1085 = vmatprep.subr.bf16.mxu0 0
        %1086 = vmatpush1.bf16.msra.mxu0 0
        %1087 = vmatprep.subr.bf16.mxu0 0
        %1088 = vmatpush1.bf16.msra.mxu0 0
        %1089 = vmatprep.subr.bf16.mxu0 0
        %1090 = vmatpush1.bf16.msra.mxu0 0
        %1091 = vmatprep.subr.bf16.mxu0 0
        %1092 = vmatpush1.bf16.msra.mxu0 0
        %1093 = vmatprep.subr.bf16.mxu0 0
        %1094 = vmatpush1.bf16.msra.mxu0 0
        %1095 = vmatprep.subr.bf16.mxu0 0
        %1096 = vmatpush1.bf16.msra.mxu0 0
        %1097 = vmatprep.mubr.bf16.mxu0 0
        %1098 = vmatmul.mubr.bf16.gmra.mrb[0].mxu0 %v839
        %v1099 = vpop.f32.mrb[0].mxu0
        %v1100 = vadd.f32 0.0, %v1099
        %v1101 = vpop.f32.mrb[0].mxu0
        %v1102 = vpop.f32.mrb[0].mxu0
        %v1103 = vpop.f32.mrb[0].mxu0
        %1104 = vdwg.mxu0
        %v1109 = vunpack.c.l.b16 %v1041
        %v1110 = vunpack.c.l.b16 %v1042
        %v1111 = vunpack.c.l.b16 %v1043
        %v1112 = vunpack.c.l.b16 %v1044
        %v1113 = vpack.c.b16 %v1110, %v1109
        %v1114 = vpack.c.b16 %v1112, %v1111
        %1117 = vmatprep.subr.bf16.mxu0 0
        %1118 = vmatpush1.bf16.msra.mxu0 %v1113
        %1119 = vmatprep.subr.bf16.mxu0 0
        %1120 = vmatpush1.bf16.msra.mxu0 %v1114
        %1121 = vmatprep.subr.bf16.mxu0 0
        %1122 = vmatpush1.bf16.msra.mxu0 0
        %1123 = vmatprep.subr.bf16.mxu0 0
        %1124 = vmatpush1.bf16.msra.mxu0 0
        %1125 = vmatprep.subr.bf16.mxu0 0
        %1126 = vmatpush1.bf16.msra.mxu0 0
        %1127 = vmatprep.subr.bf16.mxu0 0
        %1128 = vmatpush1.bf16.msra.mxu0 0
        %1129 = vmatprep.subr.bf16.mxu0 0
        %1130 = vmatpush1.bf16.msra.mxu0 0
        %1131 = vmatprep.subr.bf16.mxu0 0
        %1132 = vmatpush1.bf16.msra.mxu0 0
        %1133 = vmatprep.subr.bf16.mxu0 0
        %1134 = vmatpush1.bf16.msra.mxu0 0
        %1135 = vmatprep.subr.bf16.mxu0 0
        %1136 = vmatpush1.bf16.msra.mxu0 0
        %1137 = vmatprep.subr.bf16.mxu0 0
        %1138 = vmatpush1.bf16.msra.mxu0 0
        %1139 = vmatprep.subr.bf16.mxu0 0
        %1140 = vmatpush1.bf16.msra.mxu0 0
        %1141 = vmatprep.subr.bf16.mxu0 0
        %1142 = vmatpush1.bf16.msra.mxu0 0
        %1143 = vmatprep.subr.bf16.mxu0 0
        %1144 = vmatpush1.bf16.msra.mxu0 0
        %1145 = vmatprep.subr.bf16.mxu0 0
        %1146 = vmatpush1.bf16.msra.mxu0 0
        %1147 = vmatprep.subr.bf16.mxu0 0
        %1148 = vmatpush1.bf16.msra.mxu0 0
        %1149 = vmatprep.mubr.bf16.mxu0 0
        %1150 = vmatmul.mubr.bf16.gmra.mrb[0].mxu0 %v839
        %v1151 = vpop.f32.mrb[0].mxu0
        %v1152 = vadd.f32 0.0, %v1151
        %v1153 = vpop.f32.mrb[0].mxu0
        %v1154 = vpop.f32.mrb[0].mxu0
        %v1155 = vpop.f32.mrb[0].mxu0
        %1156 = vdwg.mxu0
        %v1161 = vunpack.c.l.b16 %v1045
        %v1162 = vunpack.c.l.b16 %v1046
        %v1163 = vunpack.c.l.b16 %v1047
        %v1164 = vunpack.c.l.b16 %v1048
        %v1165 = vpack.c.b16 %v1162, %v1161
        %v1166 = vpack.c.b16 %v1164, %v1163
        %1169 = vmatprep.subr.bf16.mxu0 0
        %1170 = vmatpush1.bf16.msra.mxu0 %v1165
        %1171 = vmatprep.subr.bf16.mxu0 0
        %1172 = vmatpush1.bf16.msra.mxu0 %v1166
        %1173 = vmatprep.subr.bf16.mxu0 0
        %1174 = vmatpush1.bf16.msra.mxu0 0
        %1175 = vmatprep.subr.bf16.mxu0 0
        %1176 = vmatpush1.bf16.msra.mxu0 0
        %1177 = vmatprep.subr.bf16.mxu0 0
        %1178 = vmatpush1.bf16.msra.mxu0 0
        %1179 = vmatprep.subr.bf16.mxu0 0
        %1180 = vmatpush1.bf16.msra.mxu0 0
        %1181 = vmatprep.subr.bf16.mxu0 0
        %1182 = vmatpush1.bf16.msra.mxu0 0
        %1183 = vmatprep.subr.bf16.mxu0 0
        %1184 = vmatpush1.bf16.msra.mxu0 0
        %1185 = vmatprep.subr.bf16.mxu0 0
        %1186 = vmatpush1.bf16.msra.mxu0 0
        %1187 = vmatprep.subr.bf16.mxu0 0
        %1188 = vmatpush1.bf16.msra.mxu0 0
        %1189 = vmatprep.subr.bf16.mxu0 0
        %1190 = vmatpush1.bf16.msra.mxu0 0
        %1191 = vmatprep.subr.bf16.mxu0 0
        %1192 = vmatpush1.bf16.msra.mxu0 0
        %1193 = vmatprep.subr.bf16.mxu0 0
        %1194 = vmatpush1.bf16.msra.mxu0 0
        %1195 = vmatprep.subr.bf16.mxu0 0
        %1196 = vmatpush1.bf16.msra.mxu0 0
        %1197 = vmatprep.subr.bf16.mxu0 0
        %1198 = vmatpush1.bf16.msra.mxu0 0
        %1199 = vmatprep.subr.bf16.mxu0 0
        %1200 = vmatpush1.bf16.msra.mxu0 0
        %1201 = vmatprep.mubr.bf16.mxu0 0
        %1202 = vmatmul.mubr.bf16.gmra.mrb[0].mxu0 %v839
        %v1203 = vpop.f32.mrb[0].mxu0
        %v1204 = vadd.f32 0.0, %v1203
        %v1205 = vpop.f32.mrb[0].mxu0
        %v1206 = vpop.f32.mrb[0].mxu0
        %v1207 = vpop.f32.mrb[0].mxu0
        %1208 = vdwg.mxu0
        %v1213 = vunpack.c.l.b16 %v1049
        %v1214 = vunpack.c.l.b16 %v1050
        %v1215 = vunpack.c.l.b16 %v1051
        %v1216 = vunpack.c.l.b16 %v1052
        %v1217 = vpack.c.b16 %v1214, %v1213
        %v1218 = vpack.c.b16 %v1216, %v1215
        %1221 = vmatprep.subr.bf16.mxu0 0
        %1222 = vmatpush1.bf16.msra.mxu0 %v1217
        %1223 = vmatprep.subr.bf16.mxu0 0
        %1224 = vmatpush1.bf16.msra.mxu0 %v1218
        %1225 = vmatprep.subr.bf16.mxu0 0
        %1226 = vmatpush1.bf16.msra.mxu0 0
        %1227 = vmatprep.subr.bf16.mxu0 0
        %1228 = vmatpush1.bf16.msra.mxu0 0
        %1229 = vmatprep.subr.bf16.mxu0 0
        %1230 = vmatpush1.bf16.msra.mxu0 0
        %1231 = vmatprep.subr.bf16.mxu0 0
        %1232 = vmatpush1.bf16.msra.mxu0 0
        %1233 = vmatprep.subr.bf16.mxu0 0
        %1234 = vmatpush1.bf16.msra.mxu0 0
        %1235 = vmatprep.subr.bf16.mxu0 0
        %1236 = vmatpush1.bf16.msra.mxu0 0
        %1237 = vmatprep.subr.bf16.mxu0 0
        %1238 = vmatpush1.bf16.msra.mxu0 0
        %1239 = vmatprep.subr.bf16.mxu0 0
        %1240 = vmatpush1.bf16.msra.mxu0 0
        %1241 = vmatprep.subr.bf16.mxu0 0
        %1242 = vmatpush1.bf16.msra.mxu0 0
        %1243 = vmatprep.subr.bf16.mxu0 0
        %1244 = vmatpush1.bf16.msra.mxu0 0
        %1245 = vmatprep.subr.bf16.mxu0 0
        %1246 = vmatpush1.bf16.msra.mxu0 0
        %1247 = vmatprep.subr.bf16.mxu0 0
        %1248 = vmatpush1.bf16.msra.mxu0 0
        %1249 = vmatprep.subr.bf16.mxu0 0
        %1250 = vmatpush1.bf16.msra.mxu0 0
        %1251 = vmatprep.subr.bf16.mxu0 0
        %1252 = vmatpush1.bf16.msra.mxu0 0
        %1253 = vmatprep.mubr.bf16.mxu0 0
        %1254 = vmatmul.mubr.bf16.gmra.mrb[0].mxu0 %v839
        %v1255 = vpop.f32.mrb[0].mxu0
        %v1256 = vadd.f32 0.0, %v1255
        %v1257 = vpop.f32.mrb[0].mxu0
        %v1258 = vpop.f32.mrb[0].mxu0
        %v1259 = vpop.f32.mrb[0].mxu0
        %1260 = vdwg.mxu0
        %v1261 = vmul.f32 %v649, 0.35355338
        %v1262 = vmul.f32 %v701, 0.35355338
        %v1263 = vmul.f32 %v753, 0.35355338
        %v1264 = vmul.f32 %v805, 0.35355338
        %v1265 = vpack.c.bf16 %v1261, %v1261
        %v1266 = vpack.c.bf16 %v1262, %v1262
        %v1267 = vpack.c.bf16 %v1263, %v1263
        %v1268 = vpack.c.bf16 %v1264, %v1264
        %v1269 = vpack.c.bf16 %v876, %v876
        %v1270 = vpack.c.bf16 %v928, %v928
        %v1271 = vpack.c.bf16 %v980, %v980
        %v1272 = vpack.c.bf16 %v1032, %v1032
        %v1273 = vpack.c.bf16 %v1100, %v1100
        %v1274 = vpack.c.bf16 %v1152, %v1152
        %v1275 = vpack.c.bf16 %v1204, %v1204
        %v1276 = vpack.c.bf16 %v1256, %v1256
        %vm1277 = vcmask 64512
        %v1279 = vsel %vm1277, %v1265, 0
        %v1282 = vsel %vm1277, %v1269, 0
        %1284 = vmatprep.subr.bf16.mxu0 0
        %1285 = vmatpush1.bf16.xpose.msra.mxu0 %v1282
        %1286 = vmatprep.subr.bf16.mxu0 0
        %1287 = vmatpush1.bf16.xpose.msra.mxu0 0
        %1288 = vmatprep.subr.bf16.mxu0 0
        %1289 = vmatpush1.bf16.xpose.msra.mxu0 0
        %1290 = vmatprep.subr.bf16.mxu0 0
        %1291 = vmatpush1.bf16.xpose.msra.mxu0 0
        %1292 = vmatprep.subr.bf16.mxu0 0
        %1293 = vmatpush1.bf16.xpose.msra.mxu0 0
        %1294 = vmatprep.subr.bf16.mxu0 0
        %1295 = vmatpush1.bf16.xpose.msra.mxu0 0
        %1296 = vmatprep.subr.bf16.mxu0 0
        %1297 = vmatpush1.bf16.xpose.msra.mxu0 0
        %1298 = vmatprep.subr.bf16.mxu0 0
        %1299 = vmatpush1.bf16.xpose.msra.mxu0 0
        %1300 = vmatprep.subr.bf16.mxu0 0
        %1301 = vmatpush1.bf16.xpose.msra.mxu0 0
        %1302 = vmatprep.subr.bf16.mxu0 0
        %1303 = vmatpush1.bf16.xpose.msra.mxu0 0
        %1304 = vmatprep.subr.bf16.mxu0 0
        %1305 = vmatpush1.bf16.xpose.msra.mxu0 0
        %1306 = vmatprep.subr.bf16.mxu0 0
        %1307 = vmatpush1.bf16.xpose.msra.mxu0 0
        %1308 = vmatprep.subr.bf16.mxu0 0
        %1309 = vmatpush1.bf16.xpose.msra.mxu0 0
        %1310 = vmatprep.subr.bf16.mxu0 0
        %1311 = vmatpush1.bf16.xpose.msra.mxu0 0
        %1312 = vmatprep.subr.bf16.mxu0 0
        %1313 = vmatpush1.bf16.xpose.msra.mxu0 0
        %1314 = vmatprep.subr.bf16.mxu0 0
        %1315 = vmatpush1.bf16.xpose.msra.mxu0 0
        %1316 = vmatprep.mubr.bf16.mxu0 0
        %1317 = vmatmul.mubr.bf16.gmra.mrb[0].mxu0 %v1279
        %v1318 = vpop.f32.mrb[0].mxu0
        %v1319 = vadd.f32 0.0, %v1318
        %v1320 = vpop.f32.mrb[0].mxu0
        %v1321 = vpop.f32.mrb[0].mxu0
        %v1322 = vpop.f32.mrb[0].mxu0
        %1323 = vdwg.mxu0
        %v1325 = vsel %vm1277, %v1266, 0
        %v1328 = vsel %vm1277, %v1270, 0
        %1330 = vmatprep.subr.bf16.mxu0 0
        %1331 = vmatpush1.bf16.xpose.msra.mxu0 %v1328
        %1332 = vmatprep.subr.bf16.mxu0 0
        %1333 = vmatpush1.bf16.xpose.msra.mxu0 0
        %1334 = vmatprep.subr.bf16.mxu0 0
        %1335 = vmatpush1.bf16.xpose.msra.mxu0 0
        %1336 = vmatprep.subr.bf16.mxu0 0
        %1337 = vmatpush1.bf16.xpose.msra.mxu0 0
        %1338 = vmatprep.subr.bf16.mxu0 0
        %1339 = vmatpush1.bf16.xpose.msra.mxu0 0
        %1340 = vmatprep.subr.bf16.mxu0 0
        %1341 = vmatpush1.bf16.xpose.msra.mxu0 0
        %1342 = vmatprep.subr.bf16.mxu0 0
        %1343 = vmatpush1.bf16.xpose.msra.mxu0 0
        %1344 = vmatprep.subr.bf16.mxu0 0
        %1345 = vmatpush1.bf16.xpose.msra.mxu0 0
        %1346 = vmatprep.subr.bf16.mxu0 0
        %1347 = vmatpush1.bf16.xpose.msra.mxu0 0
        %1348 = vmatprep.subr.bf16.mxu0 0
        %1349 = vmatpush1.bf16.xpose.msra.mxu0 0
        %1350 = vmatprep.subr.bf16.mxu0 0
        %1351 = vmatpush1.bf16.xpose.msra.mxu0 0
        %1352 = vmatprep.subr.bf16.mxu0 0
        %1353 = vmatpush1.bf16.xpose.msra.mxu0 0
        %1354 = vmatprep.subr.bf16.mxu0 0
        %1355 = vmatpush1.bf16.xpose.msra.mxu0 0
        %1356 = vmatprep.subr.bf16.mxu0 0
        %1357 = vmatpush1.bf16.xpose.msra.mxu0 0
        %1358 = vmatprep.subr.bf16.mxu0 0
        %1359 = vmatpush1.bf16.xpose.msra.mxu0 0
        %1360 = vmatprep.subr.bf16.mxu0 0
        %1361 = vmatpush1.bf16.xpose.msra.mxu0 0
        %1362 = vmatprep.mubr.bf16.mxu0 0
        %1363 = vmatmul.mubr.bf16.gmra.mrb[0].mxu0 %v1325
        %v1364 = vpop.f32.mrb[0].mxu0
        %v1365 = vadd.f32 0.0, %v1364
        %v1366 = vpop.f32.mrb[0].mxu0
        %v1367 = vpop.f32.mrb[0].mxu0
        %v1368 = vpop.f32.mrb[0].mxu0
        %1369 = vdwg.mxu0
        %v1371 = vsel %vm1277, %v1267, 0
        %v1374 = vsel %vm1277, %v1271, 0
        %1376 = vmatprep.subr.bf16.mxu0 0
        %1377 = vmatpush1.bf16.xpose.msra.mxu0 %v1374
        %1378 = vmatprep.subr.bf16.mxu0 0
        %1379 = vmatpush1.bf16.xpose.msra.mxu0 0
        %1380 = vmatprep.subr.bf16.mxu0 0
        %1381 = vmatpush1.bf16.xpose.msra.mxu0 0
        %1382 = vmatprep.subr.bf16.mxu0 0
        %1383 = vmatpush1.bf16.xpose.msra.mxu0 0
        %1384 = vmatprep.subr.bf16.mxu0 0
        %1385 = vmatpush1.bf16.xpose.msra.mxu0 0
        %1386 = vmatprep.subr.bf16.mxu0 0
        %1387 = vmatpush1.bf16.xpose.msra.mxu0 0
        %1388 = vmatprep.subr.bf16.mxu0 0
        %1389 = vmatpush1.bf16.xpose.msra.mxu0 0
        %1390 = vmatprep.subr.bf16.mxu0 0
        %1391 = vmatpush1.bf16.xpose.msra.mxu0 0
        %1392 = vmatprep.subr.bf16.mxu0 0
        %1393 = vmatpush1.bf16.xpose.msra.mxu0 0
        %1394 = vmatprep.subr.bf16.mxu0 0
        %1395 = vmatpush1.bf16.xpose.msra.mxu0 0
        %1396 = vmatprep.subr.bf16.mxu0 0
        %1397 = vmatpush1.bf16.xpose.msra.mxu0 0
        %1398 = vmatprep.subr.bf16.mxu0 0
        %1399 = vmatpush1.bf16.xpose.msra.mxu0 0
        %1400 = vmatprep.subr.bf16.mxu0 0
        %1401 = vmatpush1.bf16.xpose.msra.mxu0 0
        %1402 = vmatprep.subr.bf16.mxu0 0
        %1403 = vmatpush1.bf16.xpose.msra.mxu0 0
        %1404 = vmatprep.subr.bf16.mxu0 0
        %1405 = vmatpush1.bf16.xpose.msra.mxu0 0
        %1406 = vmatprep.subr.bf16.mxu0 0
        %1407 = vmatpush1.bf16.xpose.msra.mxu0 0
        %1408 = vmatprep.mubr.bf16.mxu0 0
        %1409 = vmatmul.mubr.bf16.gmra.mrb[0].mxu0 %v1371
        %v1410 = vpop.f32.mrb[0].mxu0
        %v1411 = vadd.f32 0.0, %v1410
        %v1412 = vpop.f32.mrb[0].mxu0
        %v1413 = vpop.f32.mrb[0].mxu0
        %v1414 = vpop.f32.mrb[0].mxu0
        %1415 = vdwg.mxu0
        %v1417 = vsel %vm1277, %v1268, 0
        %v1420 = vsel %vm1277, %v1272, 0
        %1422 = vmatprep.subr.bf16.mxu0 0
        %1423 = vmatpush1.bf16.xpose.msra.mxu0 %v1420
        %1424 = vmatprep.subr.bf16.mxu0 0
        %1425 = vmatpush1.bf16.xpose.msra.mxu0 0
        %1426 = vmatprep.subr.bf16.mxu0 0
        %1427 = vmatpush1.bf16.xpose.msra.mxu0 0
        %1428 = vmatprep.subr.bf16.mxu0 0
        %1429 = vmatpush1.bf16.xpose.msra.mxu0 0
        %1430 = vmatprep.subr.bf16.mxu0 0
        %1431 = vmatpush1.bf16.xpose.msra.mxu0 0
        %1432 = vmatprep.subr.bf16.mxu0 0
        %1433 = vmatpush1.bf16.xpose.msra.mxu0 0
        %1434 = vmatprep.subr.bf16.mxu0 0
        %1435 = vmatpush1.bf16.xpose.msra.mxu0 0
        %1436 = vmatprep.subr.bf16.mxu0 0
        %1437 = vmatpush1.bf16.xpose.msra.mxu0 0
        %1438 = vmatprep.subr.bf16.mxu0 0
        %1439 = vmatpush1.bf16.xpose.msra.mxu0 0
        %1440 = vmatprep.subr.bf16.mxu0 0
        %1441 = vmatpush1.bf16.xpose.msra.mxu0 0
        %1442 = vmatprep.subr.bf16.mxu0 0
        %1443 = vmatpush1.bf16.xpose.msra.mxu0 0
        %1444 = vmatprep.subr.bf16.mxu0 0
        %1445 = vmatpush1.bf16.xpose.msra.mxu0 0
        %1446 = vmatprep.subr.bf16.mxu0 0
        %1447 = vmatpush1.bf16.xpose.msra.mxu0 0
        %1448 = vmatprep.subr.bf16.mxu0 0
        %1449 = vmatpush1.bf16.xpose.msra.mxu0 0
        %1450 = vmatprep.subr.bf16.mxu0 0
        %1451 = vmatpush1.bf16.xpose.msra.mxu0 0
        %1452 = vmatprep.subr.bf16.mxu0 0
        %1453 = vmatpush1.bf16.xpose.msra.mxu0 0
        %1454 = vmatprep.mubr.bf16.mxu0 0
        %1455 = vmatmul.mubr.bf16.gmra.mrb[0].mxu0 %v1417
        %v1456 = vpop.f32.mrb[0].mxu0
        %v1457 = vadd.f32 0.0, %v1456
        %v1458 = vpop.f32.mrb[0].mxu0
        %v1459 = vpop.f32.mrb[0].mxu0
        %v1460 = vpop.f32.mrb[0].mxu0
        %1461 = vdwg.mxu0
        %v1462 = vlaneseq
        %v1463 = vshrl.u32 %v1462, 7
        %s1464 = smul.u32 %s34, 8
        %v1465 = vstv %s1464
        %v1466 = vadd.s32 %v1463, %v1465
        %v1467 = vlaneseq
        %v1468 = vand.u32 %v1467, 127
        %vm1469 = vcmp.gt.s32.totalorder %v1468, %v1466
        %v1470 = vsel %vm1469, -inf, %v1319
        %v1471 = vsel %vm1469, -inf, %v1365
        %v1472 = vsel %vm1469, -inf, %v1411
        %v1473 = vsel %vm1469, -inf, %v1457
        %v1474 = vsel %vm1277, %v1470, -inf
        %1475 = vmax.xlane.f32.xlu0 %v1474
        %v1476 = vpop.xlane.xlu0 %1475
        %v1477 = vsel %vm1277, %v1471, -inf
        %1478 = vmax.xlane.f32.xlu0 %v1477
        %v1479 = vpop.xlane.xlu0 %1478
        %v1480 = vsel %vm1277, %v1472, -inf
        %1481 = vmax.xlane.f32.xlu0 %v1480
        %v1482 = vpop.xlane.xlu0 %1481
        %v1483 = vsel %vm1277, %v1473, -inf
        %1484 = vmax.xlane.f32.xlu0 %v1483
        %v1485 = vpop.xlane.xlu0 %1484
        %v1486 = vsub.f32 %v1470, %v1476
        %v1487 = vsub.f32 %v1471, %v1479
        %v1488 = vsub.f32 %v1472, %v1482
        %v1489 = vsub.f32 %v1473, %v1485
        %v1490 = vmul.f32 %v1486, 1.442695
        %v1491 = vpow.pop %v1490
        %v1492 = vmul.f32 %v1487, 1.442695
        %v1493 = vpow.pop %v1492
        %v1494 = vmul.f32 %v1488, 1.442695
        %v1495 = vpow.pop %v1494
        %v1496 = vmul.f32 %v1489, 1.442695
        %v1497 = vpow.pop %v1496
        %v1498 = vsel %vm1277, %v1491, 0.0
        %1499 = vadd.xlane.f32.xlu0 %v1498
        %v1500 = vpop.xlane.xlu0 %1499
        %v1501 = vsel %vm1277, %v1493, 0.0
        %1502 = vadd.xlane.f32.xlu0 %v1501
        %v1503 = vpop.xlane.xlu0 %1502
        %v1504 = vsel %vm1277, %v1495, 0.0
        %1505 = vadd.xlane.f32.xlu0 %v1504
        %v1506 = vpop.xlane.xlu0 %1505
        %v1507 = vsel %vm1277, %v1497, 0.0
        %1508 = vadd.xlane.f32.xlu0 %v1507
        %v1509 = vpop.xlane.xlu0 %1508
        %v1510 = vrcp.pop %v1500
        %v1511 = vrcp.pop %v1503
        %v1512 = vrcp.pop %v1506
        %v1513 = vrcp.pop %v1509
        %v1514 = vmul.f32 %v1491, %v1510
        %v1515 = vmul.f32 %v1493, %v1511
        %v1516 = vmul.f32 %v1495, %v1512
        %v1517 = vmul.f32 %v1497, %v1513
        %v1518 = vpack.c.bf16 %v1514, %v1514
        %v1519 = vpack.c.bf16 %v1515, %v1515
        %v1520 = vpack.c.bf16 %v1516, %v1516
        %v1521 = vpack.c.bf16 %v1517, %v1517
        %v1523 = vsel %vm1277, %v1518, 0
        %vm1525 = vcmask 1043456
        %v1527 = vsel %vm1525, %v1273, 0
        %1529 = vmatprep.subr.bf16.mxu0 0
        %1530 = vmatpush1.bf16.msra.mxu0 %v1527
        %1531 = vmatprep.subr.bf16.mxu0 0
        %1532 = vmatpush1.bf16.msra.mxu0 0
        %1533 = vmatprep.subr.bf16.mxu0 0
        %1534 = vmatpush1.bf16.msra.mxu0 0
        %1535 = vmatprep.subr.bf16.mxu0 0
        %1536 = vmatpush1.bf16.msra.mxu0 0
        %1537 = vmatprep.subr.bf16.mxu0 0
        %1538 = vmatpush1.bf16.msra.mxu0 0
        %1539 = vmatprep.subr.bf16.mxu0 0
        %1540 = vmatpush1.bf16.msra.mxu0 0
        %1541 = vmatprep.subr.bf16.mxu0 0
        %1542 = vmatpush1.bf16.msra.mxu0 0
        %1543 = vmatprep.subr.bf16.mxu0 0
        %1544 = vmatpush1.bf16.msra.mxu0 0
        %1545 = vmatprep.subr.bf16.mxu0 0
        %1546 = vmatpush1.bf16.msra.mxu0 0
        %1547 = vmatprep.subr.bf16.mxu0 0
        %1548 = vmatpush1.bf16.msra.mxu0 0
        %1549 = vmatprep.subr.bf16.mxu0 0
        %1550 = vmatpush1.bf16.msra.mxu0 0
        %1551 = vmatprep.subr.bf16.mxu0 0
        %1552 = vmatpush1.bf16.msra.mxu0 0
        %1553 = vmatprep.subr.bf16.mxu0 0
        %1554 = vmatpush1.bf16.msra.mxu0 0
        %1555 = vmatprep.subr.bf16.mxu0 0
        %1556 = vmatpush1.bf16.msra.mxu0 0
        %1557 = vmatprep.subr.bf16.mxu0 0
        %1558 = vmatpush1.bf16.msra.mxu0 0
        %1559 = vmatprep.subr.bf16.mxu0 0
        %1560 = vmatpush1.bf16.msra.mxu0 0
        %1561 = vmatprep.mubr.bf16.mxu0 0
        %1562 = vmatmul.mubr.bf16.gmra.mrb[0].mxu0 %v1523
        %v1563 = vpop.f32.mrb[0].mxu0
        %v1564 = vadd.f32 0.0, %v1563
        %v1565 = vpop.f32.mrb[0].mxu0
        %v1566 = vpop.f32.mrb[0].mxu0
        %v1567 = vpop.f32.mrb[0].mxu0
        %1568 = vdwg.mxu0
        %v1570 = vsel %vm1277, %v1519, 0
        %v1573 = vsel %vm1525, %v1274, 0
        %1575 = vmatprep.subr.bf16.mxu0 0
        %1576 = vmatpush1.bf16.msra.mxu0 %v1573
        %1577 = vmatprep.subr.bf16.mxu0 0
        %1578 = vmatpush1.bf16.msra.mxu0 0
        %1579 = vmatprep.subr.bf16.mxu0 0
        %1580 = vmatpush1.bf16.msra.mxu0 0
        %1581 = vmatprep.subr.bf16.mxu0 0
        %1582 = vmatpush1.bf16.msra.mxu0 0
        %1583 = vmatprep.subr.bf16.mxu0 0
        %1584 = vmatpush1.bf16.msra.mxu0 0
        %1585 = vmatprep.subr.bf16.mxu0 0
        %1586 = vmatpush1.bf16.msra.mxu0 0
        %1587 = vmatprep.subr.bf16.mxu0 0
        %1588 = vmatpush1.bf16.msra.mxu0 0
        %1589 = vmatprep.subr.bf16.mxu0 0
        %1590 = vmatpush1.bf16.msra.mxu0 0
        %1591 = vmatprep.subr.bf16.mxu0 0
        %1592 = vmatpush1.bf16.msra.mxu0 0
        %1593 = vmatprep.subr.bf16.mxu0 0
        %1594 = vmatpush1.bf16.msra.mxu0 0
        %1595 = vmatprep.subr.bf16.mxu0 0
        %1596 = vmatpush1.bf16.msra.mxu0 0
        %1597 = vmatprep.subr.bf16.mxu0 0
        %1598 = vmatpush1.bf16.msra.mxu0 0
        %1599 = vmatprep.subr.bf16.mxu0 0
        %1600 = vmatpush1.bf16.msra.mxu0 0
        %1601 = vmatprep.subr.bf16.mxu0 0
        %1602 = vmatpush1.bf16.msra.mxu0 0
        %1603 = vmatprep.subr.bf16.mxu0 0
        %1604 = vmatpush1.bf16.msra.mxu0 0
        %1605 = vmatprep.subr.bf16.mxu0 0
        %1606 = vmatpush1.bf16.msra.mxu0 0
        %1607 = vmatprep.mubr.bf16.mxu0 0
        %1608 = vmatmul.mubr.bf16.gmra.mrb[0].mxu0 %v1570
        %v1609 = vpop.f32.mrb[0].mxu0
        %v1610 = vadd.f32 0.0, %v1609
        %v1611 = vpop.f32.mrb[0].mxu0
        %v1612 = vpop.f32.mrb[0].mxu0
        %v1613 = vpop.f32.mrb[0].mxu0
        %1614 = vdwg.mxu0
        %v1616 = vsel %vm1277, %v1520, 0
        %v1619 = vsel %vm1525, %v1275, 0
        %1621 = vmatprep.subr.bf16.mxu0 0
        %1622 = vmatpush1.bf16.msra.mxu0 %v1619
        %1623 = vmatprep.subr.bf16.mxu0 0
        %1624 = vmatpush1.bf16.msra.mxu0 0
        %1625 = vmatprep.subr.bf16.mxu0 0
        %1626 = vmatpush1.bf16.msra.mxu0 0
        %1627 = vmatprep.subr.bf16.mxu0 0
        %1628 = vmatpush1.bf16.msra.mxu0 0
        %1629 = vmatprep.subr.bf16.mxu0 0
        %1630 = vmatpush1.bf16.msra.mxu0 0
        %1631 = vmatprep.subr.bf16.mxu0 0
        %1632 = vmatpush1.bf16.msra.mxu0 0
        %1633 = vmatprep.subr.bf16.mxu0 0
        %1634 = vmatpush1.bf16.msra.mxu0 0
        %1635 = vmatprep.subr.bf16.mxu0 0
        %1636 = vmatpush1.bf16.msra.mxu0 0
        %1637 = vmatprep.subr.bf16.mxu0 0
        %1638 = vmatpush1.bf16.msra.mxu0 0
        %1639 = vmatprep.subr.bf16.mxu0 0
        %1640 = vmatpush1.bf16.msra.mxu0 0
        %1641 = vmatprep.subr.bf16.mxu0 0
        %1642 = vmatpush1.bf16.msra.mxu0 0
        %1643 = vmatprep.subr.bf16.mxu0 0
        %1644 = vmatpush1.bf16.msra.mxu0 0
        %1645 = vmatprep.subr.bf16.mxu0 0
        %1646 = vmatpush1.bf16.msra.mxu0 0
        %1647 = vmatprep.subr.bf16.mxu0 0
        %1648 = vmatpush1.bf16.msra.mxu0 0
        %1649 = vmatprep.subr.bf16.mxu0 0
        %1650 = vmatpush1.bf16.msra.mxu0 0
        %1651 = vmatprep.subr.bf16.mxu0 0
        %1652 = vmatpush1.bf16.msra.mxu0 0
        %1653 = vmatprep.mubr.bf16.mxu0 0
        %1654 = vmatmul.mubr.bf16.gmra.mrb[0].mxu0 %v1616
        %v1655 = vpop.f32.mrb[0].mxu0
        %v1656 = vadd.f32 0.0, %v1655
        %v1657 = vpop.f32.mrb[0].mxu0
        %v1658 = vpop.f32.mrb[0].mxu0
        %v1659 = vpop.f32.mrb[0].mxu0
        %1660 = vdwg.mxu0
        %v1662 = vsel %vm1277, %v1521, 0
        %v1665 = vsel %vm1525, %v1276, 0
        %1667 = vmatprep.subr.bf16.mxu0 0
        %1668 = vmatpush1.bf16.msra.mxu0 %v1665
        %1669 = vmatprep.subr.bf16.mxu0 0
        %1670 = vmatpush1.bf16.msra.mxu0 0
        %1671 = vmatprep.subr.bf16.mxu0 0
        %1672 = vmatpush1.bf16.msra.mxu0 0
        %1673 = vmatprep.subr.bf16.mxu0 0
        %1674 = vmatpush1.bf16.msra.mxu0 0
        %1675 = vmatprep.subr.bf16.mxu0 0
        %1676 = vmatpush1.bf16.msra.mxu0 0
        %1677 = vmatprep.subr.bf16.mxu0 0
        %1678 = vmatpush1.bf16.msra.mxu0 0
        %1679 = vmatprep.subr.bf16.mxu0 0
        %1680 = vmatpush1.bf16.msra.mxu0 0
        %1681 = vmatprep.subr.bf16.mxu0 0
        %1682 = vmatpush1.bf16.msra.mxu0 0
        %1683 = vmatprep.subr.bf16.mxu0 0
        %1684 = vmatpush1.bf16.msra.mxu0 0
        %1685 = vmatprep.subr.bf16.mxu0 0
        %1686 = vmatpush1.bf16.msra.mxu0 0
        %1687 = vmatprep.subr.bf16.mxu0 0
        %1688 = vmatpush1.bf16.msra.mxu0 0
        %1689 = vmatprep.subr.bf16.mxu0 0
        %1690 = vmatpush1.bf16.msra.mxu0 0
        %1691 = vmatprep.subr.bf16.mxu0 0
        %1692 = vmatpush1.bf16.msra.mxu0 0
        %1693 = vmatprep.subr.bf16.mxu0 0
        %1694 = vmatpush1.bf16.msra.mxu0 0
        %1695 = vmatprep.subr.bf16.mxu0 0
        %1696 = vmatpush1.bf16.msra.mxu0 0
        %1697 = vmatprep.subr.bf16.mxu0 0
        %1698 = vmatpush1.bf16.msra.mxu0 0
        %1699 = vmatprep.mubr.bf16.mxu0 0
        %1700 = vmatmul.mubr.bf16.gmra.mrb[0].mxu0 %v1662
        %v1701 = vpop.f32.mrb[0].mxu0
        %v1702 = vadd.f32 0.0, %v1701
        %v1703 = vpop.f32.mrb[0].mxu0
        %v1704 = vpop.f32.mrb[0].mxu0
        %v1705 = vpop.f32.mrb[0].mxu0
        %1706 = vdwg.mxu0
        %v1707 = vpack.c.bf16 %v1564, %v1564
        %v1708 = vpack.c.bf16 %v1610, %v1610
        %v1709 = vpack.c.bf16 %v1656, %v1656
        %v1710 = vpack.c.bf16 %v1702, %v1702
        %v1711 = vld [vmem:[%s7] sm:$0xf]
        %v1712 = vld [vmem:[%s7 + $0x4] sm:$0xf]
        %v1713 = vld [vmem:[%s7 + $0x8] sm:$0xf]
        %v1714 = vld [vmem:[%s7 + $0xc] sm:$0xf]
        %v1716 = vsel %vm1277, %v1707, 0
        %v1719 = vsel %vm1525, %v1711, 0
        %1721 = vmatprep.subr.bf16.mxu0 0
        %1722 = vmatpush1.bf16.msra.mxu0 %v1719
        %1723 = vmatprep.subr.bf16.mxu0 0
        %1724 = vmatpush1.bf16.msra.mxu0 0
        %1725 = vmatprep.subr.bf16.mxu0 0
        %1726 = vmatpush1.bf16.msra.mxu0 0
        %1727 = vmatprep.subr.bf16.mxu0 0
        %1728 = vmatpush1.bf16.msra.mxu0 0
        %1729 = vmatprep.subr.bf16.mxu0 0
        %1730 = vmatpush1.bf16.msra.mxu0 0
        %1731 = vmatprep.subr.bf16.mxu0 0
        %1732 = vmatpush1.bf16.msra.mxu0 0
        %1733 = vmatprep.subr.bf16.mxu0 0
        %1734 = vmatpush1.bf16.msra.mxu0 0
        %1735 = vmatprep.subr.bf16.mxu0 0
        %1736 = vmatpush1.bf16.msra.mxu0 0
        %1737 = vmatprep.subr.bf16.mxu0 0
        %1738 = vmatpush1.bf16.msra.mxu0 0
        %1739 = vmatprep.subr.bf16.mxu0 0
        %1740 = vmatpush1.bf16.msra.mxu0 0
        %1741 = vmatprep.subr.bf16.mxu0 0
        %1742 = vmatpush1.bf16.msra.mxu0 0
        %1743 = vmatprep.subr.bf16.mxu0 0
        %1744 = vmatpush1.bf16.msra.mxu0 0
        %1745 = vmatprep.subr.bf16.mxu0 0
        %1746 = vmatpush1.bf16.msra.mxu0 0
        %1747 = vmatprep.subr.bf16.mxu0 0
        %1748 = vmatpush1.bf16.msra.mxu0 0
        %1749 = vmatprep.subr.bf16.mxu0 0
        %1750 = vmatpush1.bf16.msra.mxu0 0
        %1751 = vmatprep.subr.bf16.mxu0 0
        %1752 = vmatpush1.bf16.msra.mxu0 0
        %1753 = vmatprep.mubr.bf16.mxu0 0
        %1754 = vmatmul.mubr.bf16.gmra.mrb[0].mxu0 %v1716
        %v1755 = vpop.f32.mrb[0].mxu0
        %v1756 = vadd.f32 0.0, %v1755
        %v1757 = vpop.f32.mrb[0].mxu0
        %v1758 = vpop.f32.mrb[0].mxu0
        %v1759 = vpop.f32.mrb[0].mxu0
        %1760 = vdwg.mxu0
        %v1762 = vsel %vm1277, %v1708, 0
        %v1765 = vsel %vm1525, %v1712, 0
        %1767 = vmatprep.subr.bf16.mxu0 0
        %1768 = vmatpush1.bf16.msra.mxu0 %v1765
        %1769 = vmatprep.subr.bf16.mxu0 0
        %1770 = vmatpush1.bf16.msra.mxu0 0
        %1771 = vmatprep.subr.bf16.mxu0 0
        %1772 = vmatpush1.bf16.msra.mxu0 0
        %1773 = vmatprep.subr.bf16.mxu0 0
        %1774 = vmatpush1.bf16.msra.mxu0 0
        %1775 = vmatprep.subr.bf16.mxu0 0
        %1776 = vmatpush1.bf16.msra.mxu0 0
        %1777 = vmatprep.subr.bf16.mxu0 0
        %1778 = vmatpush1.bf16.msra.mxu0 0
        %1779 = vmatprep.subr.bf16.mxu0 0
        %1780 = vmatpush1.bf16.msra.mxu0 0
        %1781 = vmatprep.subr.bf16.mxu0 0
        %1782 = vmatpush1.bf16.msra.mxu0 0
        %1783 = vmatprep.subr.bf16.mxu0 0
        %1784 = vmatpush1.bf16.msra.mxu0 0
        %1785 = vmatprep.subr.bf16.mxu0 0
        %1786 = vmatpush1.bf16.msra.mxu0 0
        %1787 = vmatprep.subr.bf16.mxu0 0
        %1788 = vmatpush1.bf16.msra.mxu0 0
        %1789 = vmatprep.subr.bf16.mxu0 0
        %1790 = vmatpush1.bf16.msra.mxu0 0
        %1791 = vmatprep.subr.bf16.mxu0 0
        %1792 = vmatpush1.bf16.msra.mxu0 0
        %1793 = vmatprep.subr.bf16.mxu0 0
        %1794 = vmatpush1.bf16.msra.mxu0 0
        %1795 = vmatprep.subr.bf16.mxu0 0
        %1796 = vmatpush1.bf16.msra.mxu0 0
        %1797 = vmatprep.subr.bf16.mxu0 0
        %1798 = vmatpush1.bf16.msra.mxu0 0
        %1799 = vmatprep.mubr.bf16.mxu0 0
        %1800 = vmatmul.mubr.bf16.gmra.mrb[0].mxu0 %v1762
        %v1801 = vpop.f32.mrb[0].mxu0
        %v1802 = vadd.f32 0.0, %v1801
        %v1803 = vpop.f32.mrb[0].mxu0
        %v1804 = vpop.f32.mrb[0].mxu0
        %v1805 = vpop.f32.mrb[0].mxu0
        %1806 = vdwg.mxu0
        %v1808 = vsel %vm1277, %v1709, 0
        %v1811 = vsel %vm1525, %v1713, 0
        %1813 = vmatprep.subr.bf16.mxu0 0
        %1814 = vmatpush1.bf16.msra.mxu0 %v1811
        %1815 = vmatprep.subr.bf16.mxu0 0
        %1816 = vmatpush1.bf16.msra.mxu0 0
        %1817 = vmatprep.subr.bf16.mxu0 0
        %1818 = vmatpush1.bf16.msra.mxu0 0
        %1819 = vmatprep.subr.bf16.mxu0 0
        %1820 = vmatpush1.bf16.msra.mxu0 0
        %1821 = vmatprep.subr.bf16.mxu0 0
        %1822 = vmatpush1.bf16.msra.mxu0 0
        %1823 = vmatprep.subr.bf16.mxu0 0
        %1824 = vmatpush1.bf16.msra.mxu0 0
        %1825 = vmatprep.subr.bf16.mxu0 0
        %1826 = vmatpush1.bf16.msra.mxu0 0
        %1827 = vmatprep.subr.bf16.mxu0 0
        %1828 = vmatpush1.bf16.msra.mxu0 0
        %1829 = vmatprep.subr.bf16.mxu0 0
        %1830 = vmatpush1.bf16.msra.mxu0 0
        %1831 = vmatprep.subr.bf16.mxu0 0
        %1832 = vmatpush1.bf16.msra.mxu0 0
        %1833 = vmatprep.subr.bf16.mxu0 0
        %1834 = vmatpush1.bf16.msra.mxu0 0
        %1835 = vmatprep.subr.bf16.mxu0 0
        %1836 = vmatpush1.bf16.msra.mxu0 0
        %1837 = vmatprep.subr.bf16.mxu0 0
        %1838 = vmatpush1.bf16.msra.mxu0 0
        %1839 = vmatprep.subr.bf16.mxu0 0
        %1840 = vmatpush1.bf16.msra.mxu0 0
        %1841 = vmatprep.subr.bf16.mxu0 0
        %1842 = vmatpush1.bf16.msra.mxu0 0
        %1843 = vmatprep.subr.bf16.mxu0 0
        %1844 = vmatpush1.bf16.msra.mxu0 0
        %1845 = vmatprep.mubr.bf16.mxu0 0
        %1846 = vmatmul.mubr.bf16.gmra.mrb[0].mxu0 %v1808
        %v1847 = vpop.f32.mrb[0].mxu0
        %v1848 = vadd.f32 0.0, %v1847
        %v1849 = vpop.f32.mrb[0].mxu0
        %v1850 = vpop.f32.mrb[0].mxu0
        %v1851 = vpop.f32.mrb[0].mxu0
        %1852 = vdwg.mxu0
        %v1854 = vsel %vm1277, %v1710, 0
        %v1857 = vsel %vm1525, %v1714, 0
        %1859 = vmatprep.subr.bf16.mxu0 0
        %1860 = vmatpush1.bf16.msra.mxu0 %v1857
        %1861 = vmatprep.subr.bf16.mxu0 0
        %1862 = vmatpush1.bf16.msra.mxu0 0
        %1863 = vmatprep.subr.bf16.mxu0 0
        %1864 = vmatpush1.bf16.msra.mxu0 0
        %1865 = vmatprep.subr.bf16.mxu0 0
        %1866 = vmatpush1.bf16.msra.mxu0 0
        %1867 = vmatprep.subr.bf16.mxu0 0
        %1868 = vmatpush1.bf16.msra.mxu0 0
        %1869 = vmatprep.subr.bf16.mxu0 0
        %1870 = vmatpush1.bf16.msra.mxu0 0
        %1871 = vmatprep.subr.bf16.mxu0 0
        %1872 = vmatpush1.bf16.msra.mxu0 0
        %1873 = vmatprep.subr.bf16.mxu0 0
        %1874 = vmatpush1.bf16.msra.mxu0 0
        %1875 = vmatprep.subr.bf16.mxu0 0
        %1876 = vmatpush1.bf16.msra.mxu0 0
        %1877 = vmatprep.subr.bf16.mxu0 0
        %1878 = vmatpush1.bf16.msra.mxu0 0
        %1879 = vmatprep.subr.bf16.mxu0 0
        %1880 = vmatpush1.bf16.msra.mxu0 0
        %1881 = vmatprep.subr.bf16.mxu0 0
        %1882 = vmatpush1.bf16.msra.mxu0 0
        %1883 = vmatprep.subr.bf16.mxu0 0
        %1884 = vmatpush1.bf16.msra.mxu0 0
        %1885 = vmatprep.subr.bf16.mxu0 0
        %1886 = vmatpush1.bf16.msra.mxu0 0
        %1887 = vmatprep.subr.bf16.mxu0 0
        %1888 = vmatpush1.bf16.msra.mxu0 0
        %1889 = vmatprep.subr.bf16.mxu0 0
        %1890 = vmatpush1.bf16.msra.mxu0 0
        %1891 = vmatprep.mubr.bf16.mxu0 0
        %1892 = vmatmul.mubr.bf16.gmra.mrb[0].mxu0 %v1854
        %v1893 = vpop.f32.mrb[0].mxu0
        %v1894 = vadd.f32 0.0, %v1893
        %v1895 = vpop.f32.mrb[0].mxu0
        %v1896 = vpop.f32.mrb[0].mxu0
        %v1897 = vpop.f32.mrb[0].mxu0
        %1898 = vdwg.mxu0
        %v1899 = vsel %vm537, %v1756, 0.0
        %v1900 = vsel %vm537, %v1802, 0.0
        %v1901 = vadd.f32 %v1899, %v1900
        %v1902 = vsel %vm537, %v1848, 0.0
        %v1903 = vadd.f32 %v1901, %v1902
        %v1904 = vsel %vm537, %v1894, 0.0
        %v1905 = vadd.f32 %v1903, %v1904
        %v1906 = vld [vmem:[%s8] sm:$0x1]
        %v1908 = vlaneseq
        %v1909 = vshrl.u32 %v1908, 7
        %v1910 = vsub.s32 0, %v1909
        %v1911 = vrot.slane %v1906, %v1910
        %v1913 = vadd.f32 %v1905, %v1911
        %v1914 = vadd.f32 %v533, %v1913
        %v1915 = vld [vmem:[%s9] sm:$0x1]
        %v1916 = vld [vmem:[%s10] sm:$0x1]
        %v1917 = vsel %vm537, %v1914, 0.0
        %1918 = vadd.xlane.f32.xlu0 %v1917
        %v1919 = vpop.xlane.xlu0 %1918
        %v1920 = vmul.f32 %v1919, %v541
        %v1921 = vsub.f32 %v1914, %v1920
        %v1922 = vmul.f32 %v1921, %v1921
        %v1923 = vsel %vm537, %v1922, 0.0
        %1924 = vadd.xlane.f32.xlu0 %v1923
        %v1925 = vpop.xlane.xlu0 %1924
        %v1926 = vmul.f32 %v1925, %v541
        %v1927 = vadd.f32 %v1926, 1e-05
        %v1928 = vrsqrt.pop %v1927
        %v1929 = vmul.f32 %v1921, %v1928
        %v1931 = vlaneseq
        %v1932 = vshrl.u32 %v1931, 7
        %v1933 = vsub.s32 0, %v1932
        %v1934 = vrot.slane %v1915, %v1933
        %v1936 = vmul.f32 %v1934, %v1929
        %v1938 = vlaneseq
        %v1939 = vshrl.u32 %v1938, 7
        %v1940 = vsub.s32 0, %v1939
        %v1941 = vrot.slane %v1916, %v1940
        %v1943 = vadd.f32 %v1936, %v1941
        %v1944 = vpack.c.bf16 %v1943, %v1943
        %v1945 = vld [vmem:[%s11] sm:$0xf]
        %v1946 = vld [vmem:[%s11 + $0x4] sm:$0xf]
        %v1947 = vld [vmem:[%s11 + $0x8] sm:$0xf]
        %v1948 = vld [vmem:[%s11 + $0xc] sm:$0xf]
        %v1949 = vld [vmem:[%s12] sm:$0x1]
        %v1951 = vlaneseq
        %v1952 = vshrl.u32 %v1951, 7
        %v1953 = vsub.s32 0, %v1952
        %v1954 = vrot.slane %v1949, %v1953
        %v1960 = vunpack.c.l.b16 %v1945
        %v1961 = vunpack.c.l.b16 %v1946
        %v1962 = vunpack.c.l.b16 %v1947
        %v1963 = vunpack.c.l.b16 %v1948
        %v1964 = vpack.c.b16 %v1961, %v1960
        %v1965 = vpack.c.b16 %v1963, %v1962
        %v1969 = vsel %vm537, %v1944, 0
        %1971 = vmatprep.subr.bf16.mxu0 0
        %1972 = vmatpush1.bf16.msra.mxu0 %v1964
        %1973 = vmatprep.subr.bf16.mxu0 0
        %1974 = vmatpush1.bf16.msra.mxu0 %v1965
        %1975 = vmatprep.subr.bf16.mxu0 0
        %1976 = vmatpush1.bf16.msra.mxu0 0
        %1977 = vmatprep.subr.bf16.mxu0 0
        %1978 = vmatpush1.bf16.msra.mxu0 0
        %1979 = vmatprep.subr.bf16.mxu0 0
        %1980 = vmatpush1.bf16.msra.mxu0 0
        %1981 = vmatprep.subr.bf16.mxu0 0
        %1982 = vmatpush1.bf16.msra.mxu0 0
        %1983 = vmatprep.subr.bf16.mxu0 0
        %1984 = vmatpush1.bf16.msra.mxu0 0
        %1985 = vmatprep.subr.bf16.mxu0 0
        %1986 = vmatpush1.bf16.msra.mxu0 0
        %1987 = vmatprep.subr.bf16.mxu0 0
        %1988 = vmatpush1.bf16.msra.mxu0 0
        %1989 = vmatprep.subr.bf16.mxu0 0
        %1990 = vmatpush1.bf16.msra.mxu0 0
        %1991 = vmatprep.subr.bf16.mxu0 0
        %1992 = vmatpush1.bf16.msra.mxu0 0
        %1993 = vmatprep.subr.bf16.mxu0 0
        %1994 = vmatpush1.bf16.msra.mxu0 0
        %1995 = vmatprep.subr.bf16.mxu0 0
        %1996 = vmatpush1.bf16.msra.mxu0 0
        %1997 = vmatprep.subr.bf16.mxu0 0
        %1998 = vmatpush1.bf16.msra.mxu0 0
        %1999 = vmatprep.subr.bf16.mxu0 0
        %2000 = vmatpush1.bf16.msra.mxu0 0
        %2001 = vmatprep.subr.bf16.mxu0 0
        %2002 = vmatpush1.bf16.msra.mxu0 0
        %2003 = vmatprep.mubr.bf16.mxu0 0
        %2004 = vmatmul.mubr.bf16.gmra.mrb[0].mxu0 %v1969
        %v2005 = vpop.f32.mrb[0].mxu0
        %v2006 = vadd.f32 %v1954, %v2005
        %v2007 = vpop.f32.mrb[0].mxu0
        %v2008 = vpop.f32.mrb[0].mxu0
        %v2009 = vpop.f32.mrb[0].mxu0
        %2010 = vdwg.mxu0
        %v2011 = vmul.f32 %v2006, 0.5
        %v2012 = vmul.f32 %v2006, %v2006
        %v2013 = vmul.f32 %v2006, %v2012
        %v2014 = vmul.f32 %v2013, 0.044715
        %v2015 = vadd.f32 %v2006, %v2014
        %v2016 = vmul.f32 %v2015, 0.7978846
        %v2017 = vtanh.pop %v2016
        %v2018 = vadd.f32 %v2017, 1.0
        %v2019 = vmul.f32 %v2011, %v2018
        %v2020 = vpack.c.bf16 %v2019, %v2019
        %v2021 = vld [vmem:[%s13] sm:$0xf]
        %v2022 = vld [vmem:[%s13 + $0x4] sm:$0xf]
        %v2023 = vld [vmem:[%s13 + $0x8] sm:$0xf]
        %v2024 = vld [vmem:[%s13 + $0xc] sm:$0xf]
        %v2025 = vld [vmem:[%s13 + $0x10] sm:$0xf]
        %v2026 = vld [vmem:[%s13 + $0x14] sm:$0xf]
        %v2027 = vld [vmem:[%s13 + $0x18] sm:$0xf]
        %v2028 = vld [vmem:[%s13 + $0x1c] sm:$0xf]
        %v2029 = vld [vmem:[%s13 + $0x20] sm:$0xf]
        %v2030 = vld [vmem:[%s13 + $0x24] sm:$0xf]
        %v2031 = vld [vmem:[%s13 + $0x28] sm:$0xf]
        %v2032 = vld [vmem:[%s13 + $0x2c] sm:$0xf]
        %v2033 = vld [vmem:[%s13 + $0x30] sm:$0xf]
        %v2034 = vld [vmem:[%s13 + $0x34] sm:$0xf]
        %v2035 = vld [vmem:[%s13 + $0x38] sm:$0xf]
        %v2036 = vld [vmem:[%s13 + $0x3c] sm:$0xf]
        %v2037 = vld [vmem:[%s14] sm:$0x1]
        %v2039 = vlaneseq
        %v2040 = vshrl.u32 %v2039, 7
        %v2041 = vsub.s32 0, %v2040
        %v2042 = vrot.slane %v2037, %v2041
        %v2060 = vunpack.c.l.b16 %v2021
        %v2061 = vunpack.c.l.b16 %v2022
        %v2062 = vunpack.c.l.b16 %v2023
        %v2063 = vunpack.c.l.b16 %v2024
        %v2064 = vunpack.c.l.b16 %v2025
        %v2065 = vunpack.c.l.b16 %v2026
        %v2066 = vunpack.c.l.b16 %v2027
        %v2067 = vunpack.c.l.b16 %v2028
        %v2068 = vunpack.c.l.b16 %v2029
        %v2069 = vunpack.c.l.b16 %v2030
        %v2070 = vunpack.c.l.b16 %v2031
        %v2071 = vunpack.c.l.b16 %v2032
        %v2072 = vunpack.c.l.b16 %v2033
        %v2073 = vunpack.c.l.b16 %v2034
        %v2074 = vunpack.c.l.b16 %v2035
        %v2075 = vunpack.c.l.b16 %v2036
        %v2076 = vpack.c.b16 %v2061, %v2060
        %v2077 = vpack.c.b16 %v2063, %v2062
        %v2078 = vpack.c.b16 %v2065, %v2064
        %v2079 = vpack.c.b16 %v2067, %v2066
        %v2080 = vpack.c.b16 %v2069, %v2068
        %v2081 = vpack.c.b16 %v2071, %v2070
        %v2082 = vpack.c.b16 %v2073, %v2072
        %v2083 = vpack.c.b16 %v2075, %v2074
        %2092 = vmatprep.subr.bf16.mxu0 0
        %2093 = vmatpush1.bf16.msra.mxu0 %v2076
        %2094 = vmatprep.subr.bf16.mxu0 0
        %2095 = vmatpush1.bf16.msra.mxu0 %v2077
        %2096 = vmatprep.subr.bf16.mxu0 0
        %2097 = vmatpush1.bf16.msra.mxu0 %v2078
        %2098 = vmatprep.subr.bf16.mxu0 0
        %2099 = vmatpush1.bf16.msra.mxu0 %v2079
        %2100 = vmatprep.subr.bf16.mxu0 0
        %2101 = vmatpush1.bf16.msra.mxu0 %v2080
        %2102 = vmatprep.subr.bf16.mxu0 0
        %2103 = vmatpush1.bf16.msra.mxu0 %v2081
        %2104 = vmatprep.subr.bf16.mxu0 0
        %2105 = vmatpush1.bf16.msra.mxu0 %v2082
        %2106 = vmatprep.subr.bf16.mxu0 0
        %2107 = vmatpush1.bf16.msra.mxu0 %v2083
        %2108 = vmatprep.subr.bf16.mxu0 0
        %2109 = vmatpush1.bf16.msra.mxu0 0
        %2110 = vmatprep.subr.bf16.mxu0 0
        %2111 = vmatpush1.bf16.msra.mxu0 0
        %2112 = vmatprep.subr.bf16.mxu0 0
        %2113 = vmatpush1.bf16.msra.mxu0 0
        %2114 = vmatprep.subr.bf16.mxu0 0
        %2115 = vmatpush1.bf16.msra.mxu0 0
        %2116 = vmatprep.subr.bf16.mxu0 0
        %2117 = vmatpush1.bf16.msra.mxu0 0
        %2118 = vmatprep.subr.bf16.mxu0 0
        %2119 = vmatpush1.bf16.msra.mxu0 0
        %2120 = vmatprep.subr.bf16.mxu0 0
        %2121 = vmatpush1.bf16.msra.mxu0 0
        %2122 = vmatprep.subr.bf16.mxu0 0
        %2123 = vmatpush1.bf16.msra.mxu0 0
        %2124 = vmatprep.mubr.bf16.mxu0 0
        %2125 = vmatmul.mubr.bf16.gmra.mrb[0].mxu0 %v2020
        %v2126 = vpop.f32.mrb[0].mxu0
        %v2127 = vadd.f32 %v2042, %v2126
        %v2128 = vpop.f32.mrb[0].mxu0
        %v2129 = vpop.f32.mrb[0].mxu0
        %v2130 = vpop.f32.mrb[0].mxu0
        %2131 = vdwg.mxu0
        %v2132 = vadd.f32 %v1914, %v2127
        %2133 = vst.msk [vmem:[%s520] sm:$0xff] %vm537, %v2132
        %s2134 = sand.u32 %s378, 1
        %s2135 = scalar_lea.sflag [#allocation3], %s2134
        %s2136 = sand.u32 %s378, 1
        %s2137 = smul.addr %s2136, 8
        %s2138 = scalar_lea.vmem [#allocation2], %s2137
        // Predicated region
        $region81: #{tpu_custom_call.1} parent=79 // pred_check
          %p2139 = pneg %p388
        $region82: #{tpu_custom_call.1} parent=79 // pred_check_branch
          %2141 = sbr.rel (%p2139) target = $region84
        $region83: #{tpu_custom_call.1} parent=79 // pred_region
          %s2143 = ssub.s32 128, 128
          %2144 = vsyncadd %s2135, %s2143
          %s2145 = sadd.s32 %s34, %s33
          %s2146 = smul.addr %s2145, 128
          %s2147 = scalar_lea.hbm %s15, %s2146
          %s2149 = sshll.u32 %s2138, 4
          %s2150 = int_to_ptr.vmem [resolvable:$true] %s2149
          %2152 = dma.vmem_to_hbm [thread:$0]  %s2150, 128, %s2147, %s2135
        $region84: #{tpu_custom_call.1} parent=79 // pred_fallthru
          _
      $region80: #{tpu_custom_call.1} parent=5 // pred_fallthru
        _
      %p2153 = scmp.le.s32.totalorder 2, %s24
      // Predicated region
      $region85: #{tpu_custom_call.1} parent=5 // pred_check
        %p2154 = pneg %p2153
      $region86: #{tpu_custom_call.1} parent=5 // pred_check_branch
        %2156 = sbr.rel (%p2154) target = $region88
      $region87: #{tpu_custom_call.1} parent=5 // pred_region
        %s2157 = ssub.s32 %s24, 2
        // Predicated region
        $region89: #{tpu_custom_call.1} parent=87 // pred_check
          %p2158 = pneg %p394
        $region90: #{tpu_custom_call.1} parent=87 // pred_check_branch
          %2160 = sbr.rel (%p2158) target = $region92
        $region91: #{tpu_custom_call.1} parent=87 // pred_region
          %s2161 = sand.u32 %s379, 1
          %s2162 = scalar_lea.sflag [#allocation3], %s2161
          %s2163 = sand.u32 %s379, 1
          %s2164 = smul.addr %s2163, 8
          %s2165 = scalar_lea.vmem [#allocation2], %s2164
          %2166 = dma.done %s2162, 128
        $region92: #{tpu_custom_call.1} parent=87 // pred_fallthru
          _
      $region88: #{tpu_custom_call.1} parent=5 // pred_fallthru
        _
    $region6: #{tpu_custom_call.1} parent=1 // loop_footer
      %s28 = sadd.s32 1, %s24
    $region7: #{tpu_custom_call.1} parent=1 // loop_footer_branch
      %23 = sbr.rel target = $region3
    $region8: #{tpu_custom_call.1} parent=1 // loop_exit
      _
    %2167 = vsyncpa [#allocation3], 1
    %s2168 = scalar_lea.sflag [#allocation3], 1
    %2169 = vsyncpa %s2168, 1

</llo_original>
